<compile_context>
chip_gen: v5e
topology: v5e:2x2
jax: 0.10.0
libtpu: 0.0.40
codegen_flags: <defaults>
</compile_context>

<pallas_src>
import functools
import math

import jax
import jax.numpy as jnp
from jax import lax
from jax.experimental import pallas as pl
from jax.experimental.pallas import tpu as pltpu


def _downsample_kernel(p00b_ref, p00h_ref, p01b_ref, p01h_ref, p10_ref, p11_ref,
                       w_ref, b_ref, o_ref, *, tho, wo):
    """One (batch, row-strip) tile of Conv2d(k=3, stride=2, pad=1).

    p00b/p01b : (1, tho, Cin, Wq) bf16  even-H phases (px = 0 / 1), strip rows
    p00h/p01h : (1, 1,   Cin, Wq) bf16  1-row halo just below the strip (dy=2)
    p10 /p11  : (1, tho, Cin, Wq) bf16  odd-H phases (px = 0 / 1)
    w_ref     : (Cout, 9*Cin)     bf16  weights with all taps folded into K
    b_ref     : (Cout, 1)         f32   bias column
    o_ref     : (1, Cout, tho, Wo) f32  channel-major (NCHW) output strip
    """
    w = w_ref[...]                      # hoisted: resident across the whole grid
    b = b_ref[...]

    def even_row(body_ref, halo_ref, r):
        # r is a Python int in [0, tho]; r == tho selects the halo block.
        return body_ref[0, r] if r < tho else halo_ref[0, 0]

    for y in range(tho):                # static unroll over the strip rows
        # The six phase rows feeding output row y: keyed by (dy, px).
        rows = {
            (0, 0): even_row(p00b_ref, p00h_ref, y),        # dy = 0
            (0, 1): even_row(p01b_ref, p01h_ref, y),
            (1, 0): p10_ref[0, y],                           # dy = 1
            (1, 1): p11_ref[0, y],
            (2, 0): even_row(p00b_ref, p00h_ref, y + 1),     # dy = 2 (needs halo)
            (2, 1): even_row(p01b_ref, p01h_ref, y + 1),
        }
        # Per-row im2col in (K, N) orientation: K = 9*Cin rows, N = Wo columns.
        # dx//2 is the (static) lane shift inside the phase; dx%2 picks the phase.
        slabs = [rows[(dy, dx % 2)][:, dx // 2: dx // 2 + wo]
                 for dy in range(3) for dx in range(3)]
        patches = jnp.concatenate(slabs, axis=0)             # (9*Cin, Wo) bf16
        acc = jnp.dot(w, patches, preferred_element_type=jnp.float32)  # (Cout, Wo)
        o_ref[0, :, y, :] = (acc + b).astype(o_ref.dtype)    # bias fused, no SSA acc


def _pick_row_tile(ho, per_row_bytes, budget_bytes, row_tile, max_unroll=64):
    """Pick the output-row strip height (a divisor of Ho, multiple of 8 or Ho)."""
    if row_tile is not None:
        if ho % row_tile or (row_tile % 8 and row_tile != ho):
            raise ValueError(f"row_tile={row_tile} must divide Ho={ho} and be a "
                             f"multiple of 8 (or equal Ho)")
        return row_tile
    limit = min(budget_bytes // max(per_row_bytes, 1), max_unroll)
    if ho <= max(limit, 8):
        return ho
    cands = [t for t in range(8, ho, 8) if ho % t == 0 and t <= limit]
    return max(cands) if cands else ho   # fallback: whole image per step


def downsample_pallas(x_nchw, weight, bias, *, row_tile=None):
    """PyTorch Downsample.forward: Conv2d(dim, dim, 3, stride=2, padding=1).

    x_nchw: (B, C, H, W) f32, weight: (Cout, C, 3, 3), bias: (Cout,).
    Returns (B, Cout, Ho, Wo) f32 with Ho = (H - 1)//2 + 1, Wo = (W - 1)//2 + 1.
    """
    B, C, H, W = x_nchw.shape
    Cout = weight.shape[0]
    assert weight.shape == (Cout, C, 3, 3) and bias.shape == (Cout,)
    Ho = (H - 1) // 2 + 1
    Wo = (W - 1) // 2 + 1
    Hq, Wq = Ho + 1, Wo + 1            # per-phase extents (1-row / 1-col halo incl.)
    Hp, Wp = 2 * Ho + 2, 2 * Wo + 2    # even padded extents covering every tap

    # Double-buffered VMEM bytes contributed per output row (4 bf16 phase rows
    # + the f32 output row); drives both the strip height and the VMEM limit.
    per_row = 2 * (4 * C * Wq * 2 + Cout * Wo * 4)
    tho = _pick_row_tile(Ho, per_row, budget_bytes=8 << 20, row_tile=row_tile)
    R = Ho // tho

    # --- wrapper glue (bf16-width pad / transpose / strided phase split, a 1x
    # reorganisation of the input; XLA fuses these copy-like ops):
    # phases p[py][px][b, i, c, j] = x_padded[b, c, 2*i + py, 2*j + px],
    # stored as (B, Hq, C, Wq) so H sits outside the (8, 128)-tiled dims.
    xp = jnp.pad(x_nchw.astype(jnp.bfloat16),
                 ((0, 0), (0, 0), (1, Hp - H - 1), (1, Wp - W - 1)))
    xt = jnp.transpose(xp, (0, 2, 1, 3))                     # (B, Hp, C, Wp)
    p00, p01 = xt[:, 0::2, :, 0::2], xt[:, 0::2, :, 1::2]    # (B, Hq, C, Wq)
    p10, p11 = xt[:, 1::2, :, 0::2], xt[:, 1::2, :, 1::2]

    # Weights folded along K = (dy, dx, ci); bias as a (Cout, 1) f32 column.
    w2 = jnp.transpose(weight, (0, 2, 3, 1)).reshape(Cout, 9 * C).astype(jnp.bfloat16)
    b2 = bias.astype(jnp.float32).reshape(Cout, 1)

    body = pl.BlockSpec((1, tho, C, Wq), lambda b, r: (b, r, 0, 0))
    halo = pl.BlockSpec((1, 1, C, Wq), lambda b, r: (b, (r + 1) * tho, 0, 0))

    def resident(shape):
        return pl.BlockSpec(shape, lambda b, r: (0,) * len(shape))

    step_bytes = (2 * (4 * tho * C * Wq + 2 * C * Wq) * 2    # bf16 inputs, x2 buffers
                  + 2 * Cout * tho * Wo * 4                  # f32 output, x2 buffers
                  + Cout * 9 * C * 2 + Cout * 4)             # resident weights + bias
    vmem_limit = int(min(64 << 20, max(16 << 20, 4 * step_bytes)))

    out = pl.pallas_call(
        functools.partial(_downsample_kernel, tho=tho, wo=Wo),
        out_shape=jax.ShapeDtypeStruct((B, Cout, Ho, Wo), jnp.float32),
        grid=(B, R),
        in_specs=[body, halo,                      # phase (0, 0): strip + 1-row halo
                  body, halo,                      # phase (0, 1): strip + 1-row halo
                  body, body,                      # phases (1, 0), (1, 1): strip only
                  resident((Cout, 9 * C)),         # folded weights (stay resident)
                  resident((Cout, 1))],            # bias (stays resident)
        out_specs=pl.BlockSpec((1, Cout, tho, Wo), lambda b, r: (b, 0, r, 0)),
        compiler_params=pltpu.CompilerParams(
            dimension_semantics=("parallel", "parallel"),
            vmem_limit_bytes=vmem_limit),
    )(p00, p00, p01, p01, p10, p11, w2, b2)
    # TODO(synk): for very large C, additionally tile the contraction (channel)
    # dim; not needed for the FSA_S channel counts.
    return out


def _reference_conv(x, w, b):
    # Same bf16-rounded operands as the kernel, f32 accumulation.
    y = lax.conv_general_dilated(
        x.astype(jnp.bfloat16).astype(jnp.float32),
        w.astype(jnp.bfloat16).astype(jnp.float32),
        window_strides=(2, 2), padding=((1, 1), (1, 1)),
        dimension_numbers=("NCHW", "OIHW", "NCHW"),
        preferred_element_type=jnp.float32)
    return y + b[None, :, None, None]


if __name__ == "__main__":
    key = jax.random.PRNGKey(0)
    configs = [
        (2, 16, 16, 16, None),   # small: whole image per grid step
        (1, 16, 32, 32, 8),      # exercises row tiling + the BlockSpec halo path
        (1, 16, 17, 13, None),   # odd spatial extents
    ]
    for (Bt, dim, H, W, rt) in configs:
        key, kx, kw, kb = jax.random.split(key, 4)
        x = jax.random.normal(kx, (Bt, dim, H, W), jnp.float32)
        kinit = 1.0 / math.sqrt(dim * 3 * 3)      # PyTorch Conv2d default init range
        wgt = jax.random.uniform(kw, (dim, dim, 3, 3), jnp.float32, -kinit, kinit)
        bias = jax.random.uniform(kb, (dim,), jnp.float32, -kinit, kinit)

        y = jax.jit(functools.partial(downsample_pallas, row_tile=rt))(x, wgt, bias)
        jax.block_until_ready(y)

        Ho, Wo = (H - 1) // 2 + 1, (W - 1) // 2 + 1
        assert y.shape == (Bt, dim, Ho, Wo), y.shape
        ref = _reference_conv(x, wgt, bias)
        err = float(jnp.max(jnp.abs(y - ref)))
        assert err < 2e-2, f"shape {(Bt, dim, H, W)}: max abs err {err}"
    print("KERNEL_OK")
</pallas_src>

<mosaic_0001>
module attributes {stable_mosaic.version = 11 : i64} {
  func.func @_downsample_kernel(%arg0: i32, %arg1: i32, %arg2: memref<1x8x16x9xbf16, #tpu.memory_space<vmem>>, %arg3: memref<1x1x16x9xbf16, #tpu.memory_space<vmem>>, %arg4: memref<1x8x16x9xbf16, #tpu.memory_space<vmem>>, %arg5: memref<1x1x16x9xbf16, #tpu.memory_space<vmem>>, %arg6: memref<1x8x16x9xbf16, #tpu.memory_space<vmem>>, %arg7: memref<1x8x16x9xbf16, #tpu.memory_space<vmem>>, %arg8: memref<16x144xbf16, #tpu.memory_space<vmem>>, %arg9: memref<16x1xf32, #tpu.memory_space<vmem>>, %arg10: memref<1x16x8x8xf32, #tpu.memory_space<vmem>>) attributes {dimension_semantics = [#tpu.dimension_semantics<parallel>, #tpu.dimension_semantics<parallel>], iteration_bounds = array<i64: 2, 1>, scalar_prefetch = 0 : i64, scratch_operands = 0 : i64, tpu.core_type = #tpu.core_type<tc>, window_params = [{transform_indices = @transform_0, window_bounds = array<i64: 1, 8, 16, 9>}, {transform_indices = @transform_1, window_bounds = array<i64: 1, 1, 16, 9>}, {transform_indices = @transform_2, window_bounds = array<i64: 1, 8, 16, 9>}, {transform_indices = @transform_3, window_bounds = array<i64: 1, 1, 16, 9>}, {transform_indices = @transform_4, window_bounds = array<i64: 1, 8, 16, 9>}, {transform_indices = @transform_5, window_bounds = array<i64: 1, 8, 16, 9>}, {pipeline_mode = #tpu.pipeline_mode<synchronous>, transform_indices = @transform_6, window_bounds = array<i64: 16, 144>}, {pipeline_mode = #tpu.pipeline_mode<synchronous>, transform_indices = @transform_7, window_bounds = array<i64: 16, 1>}, {transform_indices = @transform_8, window_bounds = array<i64: 1, 16, 8, 8>}]} {
    %c0 = arith.constant 0 : index
    %c0_0 = arith.constant 0 : index
    %0 = vector.load %arg8[%c0, %c0_0] : memref<16x144xbf16, #tpu.memory_space<vmem>>, vector<16x144xbf16>
    %c0_1 = arith.constant 0 : index
    %c0_2 = arith.constant 0 : index
    %1 = vector.load %arg9[%c0_1, %c0_2] : memref<16x1xf32, #tpu.memory_space<vmem>>, vector<16x1xf32>
    %c0_3 = arith.constant 0 : index
    %c0_4 = arith.constant 0 : index
    %c0_5 = arith.constant 0 : index
    %c0_6 = arith.constant 0 : index
    %2 = vector.load %arg2[%c0_3, %c0_4, %c0_5, %c0_6] : memref<1x8x16x9xbf16, #tpu.memory_space<vmem>>, vector<1x1x16x9xbf16>
    %3 = vector.shape_cast %2 : vector<1x1x16x9xbf16> to vector<16x9xbf16>
    %c0_7 = arith.constant 0 : index
    %c0_8 = arith.constant 0 : index
    %c0_9 = arith.constant 0 : index
    %c0_10 = arith.constant 0 : index
    %4 = vector.load %arg4[%c0_7, %c0_8, %c0_9, %c0_10] : memref<1x8x16x9xbf16, #tpu.memory_space<vmem>>, vector<1x1x16x9xbf16>
    %5 = vector.shape_cast %4 : vector<1x1x16x9xbf16> to vector<16x9xbf16>
    %c0_11 = arith.constant 0 : index
    %c0_12 = arith.constant 0 : index
    %c0_13 = arith.constant 0 : index
    %c0_14 = arith.constant 0 : index
    %6 = vector.load %arg6[%c0_11, %c0_12, %c0_13, %c0_14] : memref<1x8x16x9xbf16, #tpu.memory_space<vmem>>, vector<1x1x16x9xbf16>
    %7 = vector.shape_cast %6 : vector<1x1x16x9xbf16> to vector<16x9xbf16>
    %c0_15 = arith.constant 0 : index
    %c0_16 = arith.constant 0 : index
    %c0_17 = arith.constant 0 : index
    %c0_18 = arith.constant 0 : index
    %8 = vector.load %arg7[%c0_15, %c0_16, %c0_17, %c0_18] : memref<1x8x16x9xbf16, #tpu.memory_space<vmem>>, vector<1x1x16x9xbf16>
    %9 = vector.shape_cast %8 : vector<1x1x16x9xbf16> to vector<16x9xbf16>
    %c0_19 = arith.constant 0 : index
    %c1 = arith.constant 1 : index
    %c0_20 = arith.constant 0 : index
    %c0_21 = arith.constant 0 : index
    %10 = vector.load %arg2[%c0_19, %c1, %c0_20, %c0_21] : memref<1x8x16x9xbf16, #tpu.memory_space<vmem>>, vector<1x1x16x9xbf16>
    %11 = vector.shape_cast %10 : vector<1x1x16x9xbf16> to vector<16x9xbf16>
    %c0_22 = arith.constant 0 : index
    %c1_23 = arith.constant 1 : index
    %c0_24 = arith.constant 0 : index
    %c0_25 = arith.constant 0 : index
    %12 = vector.load %arg4[%c0_22, %c1_23, %c0_24, %c0_25] : memref<1x8x16x9xbf16, #tpu.memory_space<vmem>>, vector<1x1x16x9xbf16>
    %13 = vector.shape_cast %12 : vector<1x1x16x9xbf16> to vector<16x9xbf16>
    %14 = vector.extract_strided_slice %3 {offsets = [0, 0], sizes = [16, 8], strides = [1, 1]} : vector<16x9xbf16> to vector<16x8xbf16>
    %15 = vector.extract_strided_slice %5 {offsets = [0, 0], sizes = [16, 8], strides = [1, 1]} : vector<16x9xbf16> to vector<16x8xbf16>
    %16 = vector.extract_strided_slice %3 {offsets = [0, 1], sizes = [16, 8], strides = [1, 1]} : vector<16x9xbf16> to vector<16x8xbf16>
    %17 = vector.extract_strided_slice %7 {offsets = [0, 0], sizes = [16, 8], strides = [1, 1]} : vector<16x9xbf16> to vector<16x8xbf16>
    %18 = vector.extract_strided_slice %9 {offsets = [0, 0], sizes = [16, 8], strides = [1, 1]} : vector<16x9xbf16> to vector<16x8xbf16>
    %19 = vector.extract_strided_slice %7 {offsets = [0, 1], sizes = [16, 8], strides = [1, 1]} : vector<16x9xbf16> to vector<16x8xbf16>
    %20 = vector.extract_strided_slice %11 {offsets = [0, 0], sizes = [16, 8], strides = [1, 1]} : vector<16x9xbf16> to vector<16x8xbf16>
    %21 = vector.extract_strided_slice %13 {offsets = [0, 0], sizes = [16, 8], strides = [1, 1]} : vector<16x9xbf16> to vector<16x8xbf16>
    %22 = vector.extract_strided_slice %11 {offsets = [0, 1], sizes = [16, 8], strides = [1, 1]} : vector<16x9xbf16> to vector<16x8xbf16>
    %23 = tpu.concatenate %14, %15, %16, %17, %18, %19, %20, %21, %22 in 0 : vector<16x8xbf16>, vector<16x8xbf16>, vector<16x8xbf16>, vector<16x8xbf16>, vector<16x8xbf16>, vector<16x8xbf16>, vector<16x8xbf16>, vector<16x8xbf16>, vector<16x8xbf16> -> vector<144x8xbf16>
    %cst = arith.constant dense<0.000000e+00> : vector<16x8xf32>
    %24 = tpu.matmul %0, %23, %cst {dimension_numbers = #tpu.dot_dimension_numbers<[1], [0], [0], [1], [0, 0, 1, 1], [], []>} : vector<16x144xbf16>, vector<144x8xbf16>, vector<16x8xf32> -> vector<16x8xf32>
    %25 = vector.broadcast %1 : vector<16x1xf32> to vector<16x8xf32>
    %26 = arith.addf %24, %25 : vector<16x8xf32>
    %c0_26 = arith.constant 0 : index
    %c0_27 = arith.constant 0 : index
    %c0_28 = arith.constant 0 : index
    %c0_29 = arith.constant 0 : index
    %27 = vector.load %arg10[%c0_26, %c0_27, %c0_28, %c0_29] : memref<1x16x8x8xf32, #tpu.memory_space<vmem>>, vector<1x16x1x8xf32>
    %28 = vector.shape_cast %27 : vector<1x16x1x8xf32> to vector<16x8xf32>
    %29 = vector.shape_cast %26 : vector<16x8xf32> to vector<1x16x1x8xf32>
    tpu.vector_store %arg10[%c0_26, %c0_27, %c0_28, %c0_29], %29 {strides = array<i32>} : memref<1x16x8x8xf32, #tpu.memory_space<vmem>>, vector<1x16x1x8xf32>,
    %c0_30 = arith.constant 0 : index
    %c1_31 = arith.constant 1 : index
    %c0_32 = arith.constant 0 : index
    %c0_33 = arith.constant 0 : index
    %30 = vector.load %arg2[%c0_30, %c1_31, %c0_32, %c0_33] : memref<1x8x16x9xbf16, #tpu.memory_space<vmem>>, vector<1x1x16x9xbf16>
    %31 = vector.shape_cast %30 : vector<1x1x16x9xbf16> to vector<16x9xbf16>
    %c0_34 = arith.constant 0 : index
    %c1_35 = arith.constant 1 : index
    %c0_36 = arith.constant 0 : index
    %c0_37 = arith.constant 0 : index
    %32 = vector.load %arg4[%c0_34, %c1_35, %c0_36, %c0_37] : memref<1x8x16x9xbf16, #tpu.memory_space<vmem>>, vector<1x1x16x9xbf16>
    %33 = vector.shape_cast %32 : vector<1x1x16x9xbf16> to vector<16x9xbf16>
    %c0_38 = arith.constant 0 : index
    %c1_39 = arith.constant 1 : index
    %c0_40 = arith.constant 0 : index
    %c0_41 = arith.constant 0 : index
    %34 = vector.load %arg6[%c0_38, %c1_39, %c0_40, %c0_41] : memref<1x8x16x9xbf16, #tpu.memory_space<vmem>>, vector<1x1x16x9xbf16>
    %35 = vector.shape_cast %34 : vector<1x1x16x9xbf16> to vector<16x9xbf16>
    %c0_42 = arith.constant 0 : index
    %c1_43 = arith.constant 1 : index
    %c0_44 = arith.constant 0 : index
    %c0_45 = arith.constant 0 : index
    %36 = vector.load %arg7[%c0_42, %c1_43, %c0_44, %c0_45] : memref<1x8x16x9xbf16, #tpu.memory_space<vmem>>, vector<1x1x16x9xbf16>
    %37 = vector.shape_cast %36 : vector<1x1x16x9xbf16> to vector<16x9xbf16>
    %c0_46 = arith.constant 0 : index
    %c2 = arith.constant 2 : index
    %c0_47 = arith.constant 0 : index
    %c0_48 = arith.constant 0 : index
    %38 = vector.load %arg2[%c0_46, %c2, %c0_47, %c0_48] : memref<1x8x16x9xbf16, #tpu.memory_space<vmem>>, vector<1x1x16x9xbf16>
    %39 = vector.shape_cast %38 : vector<1x1x16x9xbf16> to vector<16x9xbf16>
    %c0_49 = arith.constant 0 : index
    %c2_50 = arith.constant 2 : index
    %c0_51 = arith.constant 0 : index
    %c0_52 = arith.constant 0 : index
    %40 = vector.load %arg4[%c0_49, %c2_50, %c0_51, %c0_52] : memref<1x8x16x9xbf16, #tpu.memory_space<vmem>>, vector<1x1x16x9xbf16>
    %41 = vector.shape_cast %40 : vector<1x1x16x9xbf16> to vector<16x9xbf16>
    %42 = vector.extract_strided_slice %31 {offsets = [0, 0], sizes = [16, 8], strides = [1, 1]} : vector<16x9xbf16> to vector<16x8xbf16>
    %43 = vector.extract_strided_slice %33 {offsets = [0, 0], sizes = [16, 8], strides = [1, 1]} : vector<16x9xbf16> to vector<16x8xbf16>
    %44 = vector.extract_strided_slice %31 {offsets = [0, 1], sizes = [16, 8], strides = [1, 1]} : vector<16x9xbf16> to vector<16x8xbf16>
    %45 = vector.extract_strided_slice %35 {offsets = [0, 0], sizes = [16, 8], strides = [1, 1]} : vector<16x9xbf16> to vector<16x8xbf16>
    %46 = vector.extract_strided_slice %37 {offsets = [0, 0], sizes = [16, 8], strides = [1, 1]} : vector<16x9xbf16> to vector<16x8xbf16>
    %47 = vector.extract_strided_slice %35 {offsets = [0, 1], sizes = [16, 8], strides = [1, 1]} : vector<16x9xbf16> to vector<16x8xbf16>
    %48 = vector.extract_strided_slice %39 {offsets = [0, 0], sizes = [16, 8], strides = [1, 1]} : vector<16x9xbf16> to vector<16x8xbf16>
    %49 = vector.extract_strided_slice %41 {offsets = [0, 0], sizes = [16, 8], strides = [1, 1]} : vector<16x9xbf16> to vector<16x8xbf16>
    %50 = vector.extract_strided_slice %39 {offsets = [0, 1], sizes = [16, 8], strides = [1, 1]} : vector<16x9xbf16> to vector<16x8xbf16>
    %51 = tpu.concatenate %42, %43, %44, %45, %46, %47, %48, %49, %50 in 0 : vector<16x8xbf16>, vector<16x8xbf16>, vector<16x8xbf16>, vector<16x8xbf16>, vector<16x8xbf16>, vector<16x8xbf16>, vector<16x8xbf16>, vector<16x8xbf16>, vector<16x8xbf16> -> vector<144x8xbf16>
    %cst_53 = arith.constant dense<0.000000e+00> : vector<16x8xf32>
    %52 = tpu.matmul %0, %51, %cst_53 {dimension_numbers = #tpu.dot_dimension_numbers<[1], [0], [0], [1], [0, 0, 1, 1], [], []>} : vector<16x144xbf16>, vector<144x8xbf16>, vector<16x8xf32> -> vector<16x8xf32>
    %53 = vector.broadcast %1 : vector<16x1xf32> to vector<16x8xf32>
    %54 = arith.addf %52, %53 : vector<16x8xf32>
    %c0_54 = arith.constant 0 : index
    %c0_55 = arith.constant 0 : index
    %c1_56 = arith.constant 1 : index
    %c0_57 = arith.constant 0 : index
    %55 = vector.load %arg10[%c0_54, %c0_55, %c1_56, %c0_57] : memref<1x16x8x8xf32, #tpu.memory_space<vmem>>, vector<1x16x1x8xf32>
    %56 = vector.shape_cast %55 : vector<1x16x1x8xf32> to vector<16x8xf32>
    %57 = vector.shape_cast %54 : vector<16x8xf32> to vector<1x16x1x8xf32>
    tpu.vector_store %arg10[%c0_54, %c0_55, %c1_56, %c0_57], %57 {strides = array<i32>} : memref<1x16x8x8xf32, #tpu.memory_space<vmem>>, vector<1x16x1x8xf32>,
    %c0_58 = arith.constant 0 : index
    %c2_59 = arith.constant 2 : index
    %c0_60 = arith.constant 0 : index
    %c0_61 = arith.constant 0 : index
    %58 = vector.load %arg2[%c0_58, %c2_59, %c0_60, %c0_61] : memref<1x8x16x9xbf16, #tpu.memory_space<vmem>>, vector<1x1x16x9xbf16>
    %59 = vector.shape_cast %58 : vector<1x1x16x9xbf16> to vector<16x9xbf16>
    %c0_62 = arith.constant 0 : index
    %c2_63 = arith.constant 2 : index
    %c0_64 = arith.constant 0 : index
    %c0_65 = arith.constant 0 : index
    %60 = vector.load %arg4[%c0_62, %c2_63, %c0_64, %c0_65] : memref<1x8x16x9xbf16, #tpu.memory_space<vmem>>, vector<1x1x16x9xbf16>
    %61 = vector.shape_cast %60 : vector<1x1x16x9xbf16> to vector<16x9xbf16>
    %c0_66 = arith.constant 0 : index
    %c2_67 = arith.constant 2 : index
    %c0_68 = arith.constant 0 : index
    %c0_69 = arith.constant 0 : index
    %62 = vector.load %arg6[%c0_66, %c2_67, %c0_68, %c0_69] : memref<1x8x16x9xbf16, #tpu.memory_space<vmem>>, vector<1x1x16x9xbf16>
    %63 = vector.shape_cast %62 : vector<1x1x16x9xbf16> to vector<16x9xbf16>
    %c0_70 = arith.constant 0 : index
    %c2_71 = arith.constant 2 : index
    %c0_72 = arith.constant 0 : index
    %c0_73 = arith.constant 0 : index
    %64 = vector.load %arg7[%c0_70, %c2_71, %c0_72, %c0_73] : memref<1x8x16x9xbf16, #tpu.memory_space<vmem>>, vector<1x1x16x9xbf16>
    %65 = vector.shape_cast %64 : vector<1x1x16x9xbf16> to vector<16x9xbf16>
    %c0_74 = arith.constant 0 : index
    %c3 = arith.constant 3 : index
    %c0_75 = arith.constant 0 : index
    %c0_76 = arith.constant 0 : index
    %66 = vector.load %arg2[%c0_74, %c3, %c0_75, %c0_76] : memref<1x8x16x9xbf16, #tpu.memory_space<vmem>>, vector<1x1x16x9xbf16>
    %67 = vector.shape_cast %66 : vector<1x1x16x9xbf16> to vector<16x9xbf16>
    %c0_77 = arith.constant 0 : index
    %c3_78 = arith.constant 3 : index
    %c0_79 = arith.constant 0 : index
    %c0_80 = arith.constant 0 : index
    %68 = vector.load %arg4[%c0_77, %c3_78, %c0_79, %c0_80] : memref<1x8x16x9xbf16, #tpu.memory_space<vmem>>, vector<1x1x16x9xbf16>
    %69 = vector.shape_cast %68 : vector<1x1x16x9xbf16> to vector<16x9xbf16>
    %70 = vector.extract_strided_slice %59 {offsets = [0, 0], sizes = [16, 8], strides = [1, 1]} : vector<16x9xbf16> to vector<16x8xbf16>
    %71 = vector.extract_strided_slice %61 {offsets = [0, 0], sizes = [16, 8], strides = [1, 1]} : vector<16x9xbf16> to vector<16x8xbf16>
    %72 = vector.extract_strided_slice %59 {offsets = [0, 1], sizes = [16, 8], strides = [1, 1]} : vector<16x9xbf16> to vector<16x8xbf16>
    %73 = vector.extract_strided_slice %63 {offsets = [0, 0], sizes = [16, 8], strides = [1, 1]} : vector<16x9xbf16> to vector<16x8xbf16>
    %74 = vector.extract_strided_slice %65 {offsets = [0, 0], sizes = [16, 8], strides = [1, 1]} : vector<16x9xbf16> to vector<16x8xbf16>
    %75 = vector.extract_strided_slice %63 {offsets = [0, 1], sizes = [16, 8], strides = [1, 1]} : vector<16x9xbf16> to vector<16x8xbf16>
    %76 = vector.extract_strided_slice %67 {offsets = [0, 0], sizes = [16, 8], strides = [1, 1]} : vector<16x9xbf16> to vector<16x8xbf16>
    %77 = vector.extract_strided_slice %69 {offsets = [0, 0], sizes = [16, 8], strides = [1, 1]} : vector<16x9xbf16> to vector<16x8xbf16>
    %78 = vector.extract_strided_slice %67 {offsets = [0, 1], sizes = [16, 8], strides = [1, 1]} : vector<16x9xbf16> to vector<16x8xbf16>
    %79 = tpu.concatenate %70, %71, %72, %73, %74, %75, %76, %77, %78 in 0 : vector<16x8xbf16>, vector<16x8xbf16>, vector<16x8xbf16>, vector<16x8xbf16>, vector<16x8xbf16>, vector<16x8xbf16>, vector<16x8xbf16>, vector<16x8xbf16>, vector<16x8xbf16> -> vector<144x8xbf16>
    %cst_81 = arith.constant dense<0.000000e+00> : vector<16x8xf32>
    %80 = tpu.matmul %0, %79, %cst_81 {dimension_numbers = #tpu.dot_dimension_numbers<[1], [0], [0], [1], [0, 0, 1, 1], [], []>} : vector<16x144xbf16>, vector<144x8xbf16>, vector<16x8xf32> -> vector<16x8xf32>
    %81 = vector.broadcast %1 : vector<16x1xf32> to vector<16x8xf32>
    %82 = arith.addf %80, %81 : vector<16x8xf32>
    %c0_82 = arith.constant 0 : index
    %c0_83 = arith.constant 0 : index
    %c2_84 = arith.constant 2 : index
    %c0_85 = arith.constant 0 : index
    %83 = vector.load %arg10[%c0_82, %c0_83, %c2_84, %c0_85] : memref<1x16x8x8xf32, #tpu.memory_space<vmem>>, vector<1x16x1x8xf32>
    %84 = vector.shape_cast %83 : vector<1x16x1x8xf32> to vector<16x8xf32>
    %85 = vector.shape_cast %82 : vector<16x8xf32> to vector<1x16x1x8xf32>
    tpu.vector_store %arg10[%c0_82, %c0_83, %c2_84, %c0_85], %85 {strides = array<i32>} : memref<1x16x8x8xf32, #tpu.memory_space<vmem>>, vector<1x16x1x8xf32>,
    %c0_86 = arith.constant 0 : index
    %c3_87 = arith.constant 3 : index
    %c0_88 = arith.constant 0 : index
    %c0_89 = arith.constant 0 : index
    %86 = vector.load %arg2[%c0_86, %c3_87, %c0_88, %c0_89] : memref<1x8x16x9xbf16, #tpu.memory_space<vmem>>, vector<1x1x16x9xbf16>
    %87 = vector.shape_cast %86 : vector<1x1x16x9xbf16> to vector<16x9xbf16>
    %c0_90 = arith.constant 0 : index
    %c3_91 = arith.constant 3 : index
    %c0_92 = arith.constant 0 : index
    %c0_93 = arith.constant 0 : index
    %88 = vector.load %arg4[%c0_90, %c3_91, %c0_92, %c0_93] : memref<1x8x16x9xbf16, #tpu.memory_space<vmem>>, vector<1x1x16x9xbf16>
    %89 = vector.shape_cast %88 : vector<1x1x16x9xbf16> to vector<16x9xbf16>
    %c0_94 = arith.constant 0 : index
    %c3_95 = arith.constant 3 : index
    %c0_96 = arith.constant 0 : index
    %c0_97 = arith.constant 0 : index
    %90 = vector.load %arg6[%c0_94, %c3_95, %c0_96, %c0_97] : memref<1x8x16x9xbf16, #tpu.memory_space<vmem>>, vector<1x1x16x9xbf16>
    %91 = vector.shape_cast %90 : vector<1x1x16x9xbf16> to vector<16x9xbf16>
    %c0_98 = arith.constant 0 : index
    %c3_99 = arith.constant 3 : index
    %c0_100 = arith.constant 0 : index
    %c0_101 = arith.constant 0 : index
    %92 = vector.load %arg7[%c0_98, %c3_99, %c0_100, %c0_101] : memref<1x8x16x9xbf16, #tpu.memory_space<vmem>>, vector<1x1x16x9xbf16>
    %93 = vector.shape_cast %92 : vector<1x1x16x9xbf16> to vector<16x9xbf16>
    %c0_102 = arith.constant 0 : index
    %c4 = arith.constant 4 : index
    %c0_103 = arith.constant 0 : index
    %c0_104 = arith.constant 0 : index
    %94 = vector.load %arg2[%c0_102, %c4, %c0_103, %c0_104] : memref<1x8x16x9xbf16, #tpu.memory_space<vmem>>, vector<1x1x16x9xbf16>
    %95 = vector.shape_cast %94 : vector<1x1x16x9xbf16> to vector<16x9xbf16>
    %c0_105 = arith.constant 0 : index
    %c4_106 = arith.constant 4 : index
    %c0_107 = arith.constant 0 : index
    %c0_108 = arith.constant 0 : index
    %96 = vector.load %arg4[%c0_105, %c4_106, %c0_107, %c0_108] : memref<1x8x16x9xbf16, #tpu.memory_space<vmem>>, vector<1x1x16x9xbf16>
    %97 = vector.shape_cast %96 : vector<1x1x16x9xbf16> to vector<16x9xbf16>
    %98 = vector.extract_strided_slice %87 {offsets = [0, 0], sizes = [16, 8], strides = [1, 1]} : vector<16x9xbf16> to vector<16x8xbf16>
    %99 = vector.extract_strided_slice %89 {offsets = [0, 0], sizes = [16, 8], strides = [1, 1]} : vector<16x9xbf16> to vector<16x8xbf16>
    %100 = vector.extract_strided_slice %87 {offsets = [0, 1], sizes = [16, 8], strides = [1, 1]} : vector<16x9xbf16> to vector<16x8xbf16>
    %101 = vector.extract_strided_slice %91 {offsets = [0, 0], sizes = [16, 8], strides = [1, 1]} : vector<16x9xbf16> to vector<16x8xbf16>
    %102 = vector.extract_strided_slice %93 {offsets = [0, 0], sizes = [16, 8], strides = [1, 1]} : vector<16x9xbf16> to vector<16x8xbf16>
    %103 = vector.extract_strided_slice %91 {offsets = [0, 1], sizes = [16, 8], strides = [1, 1]} : vector<16x9xbf16> to vector<16x8xbf16>
    %104 = vector.extract_strided_slice %95 {offsets = [0, 0], sizes = [16, 8], strides = [1, 1]} : vector<16x9xbf16> to vector<16x8xbf16>
    %105 = vector.extract_strided_slice %97 {offsets = [0, 0], sizes = [16, 8], strides = [1, 1]} : vector<16x9xbf16> to vector<16x8xbf16>
    %106 = vector.extract_strided_slice %95 {offsets = [0, 1], sizes = [16, 8], strides = [1, 1]} : vector<16x9xbf16> to vector<16x8xbf16>
    %107 = tpu.concatenate %98, %99, %100, %101, %102, %103, %104, %105, %106 in 0 : vector<16x8xbf16>, vector<16x8xbf16>, vector<16x8xbf16>, vector<16x8xbf16>, vector<16x8xbf16>, vector<16x8xbf16>, vector<16x8xbf16>, vector<16x8xbf16>, vector<16x8xbf16> -> vector<144x8xbf16>
    %cst_109 = arith.constant dense<0.000000e+00> : vector<16x8xf32>
    %108 = tpu.matmul %0, %107, %cst_109 {dimension_numbers = #tpu.dot_dimension_numbers<[1], [0], [0], [1], [0, 0, 1, 1], [], []>} : vector<16x144xbf16>, vector<144x8xbf16>, vector<16x8xf32> -> vector<16x8xf32>
    %109 = vector.broadcast %1 : vector<16x1xf32> to vector<16x8xf32>
    %110 = arith.addf %108, %109 : vector<16x8xf32>
    %c0_110 = arith.constant 0 : index
    %c0_111 = arith.constant 0 : index
    %c3_112 = arith.constant 3 : index
    %c0_113 = arith.constant 0 : index
    %111 = vector.load %arg10[%c0_110, %c0_111, %c3_112, %c0_113] : memref<1x16x8x8xf32, #tpu.memory_space<vmem>>, vector<1x16x1x8xf32>
    %112 = vector.shape_cast %111 : vector<1x16x1x8xf32> to vector<16x8xf32>
    %113 = vector.shape_cast %110 : vector<16x8xf32> to vector<1x16x1x8xf32>
    tpu.vector_store %arg10[%c0_110, %c0_111, %c3_112, %c0_113], %113 {strides = array<i32>} : memref<1x16x8x8xf32, #tpu.memory_space<vmem>>, vector<1x16x1x8xf32>,
    %c0_114 = arith.constant 0 : index
    %c4_115 = arith.constant 4 : index
    %c0_116 = arith.constant 0 : index
    %c0_117 = arith.constant 0 : index
    %114 = vector.load %arg2[%c0_114, %c4_115, %c0_116, %c0_117] : memref<1x8x16x9xbf16, #tpu.memory_space<vmem>>, vector<1x1x16x9xbf16>
    %115 = vector.shape_cast %114 : vector<1x1x16x9xbf16> to vector<16x9xbf16>
    %c0_118 = arith.constant 0 : index
    %c4_119 = arith.constant 4 : index
    %c0_120 = arith.constant 0 : index
    %c0_121 = arith.constant 0 : index
    %116 = vector.load %arg4[%c0_118, %c4_119, %c0_120, %c0_121] : memref<1x8x16x9xbf16, #tpu.memory_space<vmem>>, vector<1x1x16x9xbf16>
    %117 = vector.shape_cast %116 : vector<1x1x16x9xbf16> to vector<16x9xbf16>
    %c0_122 = arith.constant 0 : index
    %c4_123 = arith.constant 4 : index
    %c0_124 = arith.constant 0 : index
    %c0_125 = arith.constant 0 : index
    %118 = vector.load %arg6[%c0_122, %c4_123, %c0_124, %c0_125] : memref<1x8x16x9xbf16, #tpu.memory_space<vmem>>, vector<1x1x16x9xbf16>
    %119 = vector.shape_cast %118 : vector<1x1x16x9xbf16> to vector<16x9xbf16>
    %c0_126 = arith.constant 0 : index
    %c4_127 = arith.constant 4 : index
    %c0_128 = arith.constant 0 : index
    %c0_129 = arith.constant 0 : index
    %120 = vector.load %arg7[%c0_126, %c4_127, %c0_128, %c0_129] : memref<1x8x16x9xbf16, #tpu.memory_space<vmem>>, vector<1x1x16x9xbf16>
    %121 = vector.shape_cast %120 : vector<1x1x16x9xbf16> to vector<16x9xbf16>
    %c0_130 = arith.constant 0 : index
    %c5 = arith.constant 5 : index
    %c0_131 = arith.constant 0 : index
    %c0_132 = arith.constant 0 : index
    %122 = vector.load %arg2[%c0_130, %c5, %c0_131, %c0_132] : memref<1x8x16x9xbf16, #tpu.memory_space<vmem>>, vector<1x1x16x9xbf16>
    %123 = vector.shape_cast %122 : vector<1x1x16x9xbf16> to vector<16x9xbf16>
    %c0_133 = arith.constant 0 : index
    %c5_134 = arith.constant 5 : index
    %c0_135 = arith.constant 0 : index
    %c0_136 = arith.constant 0 : index
    %124 = vector.load %arg4[%c0_133, %c5_134, %c0_135, %c0_136] : memref<1x8x16x9xbf16, #tpu.memory_space<vmem>>, vector<1x1x16x9xbf16>
    %125 = vector.shape_cast %124 : vector<1x1x16x9xbf16> to vector<16x9xbf16>
    %126 = vector.extract_strided_slice %115 {offsets = [0, 0], sizes = [16, 8], strides = [1, 1]} : vector<16x9xbf16> to vector<16x8xbf16>
    %127 = vector.extract_strided_slice %117 {offsets = [0, 0], sizes = [16, 8], strides = [1, 1]} : vector<16x9xbf16> to vector<16x8xbf16>
    %128 = vector.extract_strided_slice %115 {offsets = [0, 1], sizes = [16, 8], strides = [1, 1]} : vector<16x9xbf16> to vector<16x8xbf16>
    %129 = vector.extract_strided_slice %119 {offsets = [0, 0], sizes = [16, 8], strides = [1, 1]} : vector<16x9xbf16> to vector<16x8xbf16>
    %130 = vector.extract_strided_slice %121 {offsets = [0, 0], sizes = [16, 8], strides = [1, 1]} : vector<16x9xbf16> to vector<16x8xbf16>
    %131 = vector.extract_strided_slice %119 {offsets = [0, 1], sizes = [16, 8], strides = [1, 1]} : vector<16x9xbf16> to vector<16x8xbf16>
    %132 = vector.extract_strided_slice %123 {offsets = [0, 0], sizes = [16, 8], strides = [1, 1]} : vector<16x9xbf16> to vector<16x8xbf16>
    %133 = vector.extract_strided_slice %125 {offsets = [0, 0], sizes = [16, 8], strides = [1, 1]} : vector<16x9xbf16> to vector<16x8xbf16>
    %134 = vector.extract_strided_slice %123 {offsets = [0, 1], sizes = [16, 8], strides = [1, 1]} : vector<16x9xbf16> to vector<16x8xbf16>
    %135 = tpu.concatenate %126, %127, %128, %129, %130, %131, %132, %133, %134 in 0 : vector<16x8xbf16>, vector<16x8xbf16>, vector<16x8xbf16>, vector<16x8xbf16>, vector<16x8xbf16>, vector<16x8xbf16>, vector<16x8xbf16>, vector<16x8xbf16>, vector<16x8xbf16> -> vector<144x8xbf16>
    %cst_137 = arith.constant dense<0.000000e+00> : vector<16x8xf32>
    %136 = tpu.matmul %0, %135, %cst_137 {dimension_numbers = #tpu.dot_dimension_numbers<[1], [0], [0], [1], [0, 0, 1, 1], [], []>} : vector<16x144xbf16>, vector<144x8xbf16>, vector<16x8xf32> -> vector<16x8xf32>
    %137 = vector.broadcast %1 : vector<16x1xf32> to vector<16x8xf32>
    %138 = arith.addf %136, %137 : vector<16x8xf32>
    %c0_138 = arith.constant 0 : index
    %c0_139 = arith.constant 0 : index
    %c4_140 = arith.constant 4 : index
    %c0_141 = arith.constant 0 : index
    %139 = vector.load %arg10[%c0_138, %c0_139, %c4_140, %c0_141] : memref<1x16x8x8xf32, #tpu.memory_space<vmem>>, vector<1x16x1x8xf32>
    %140 = vector.shape_cast %139 : vector<1x16x1x8xf32> to vector<16x8xf32>
    %141 = vector.shape_cast %138 : vector<16x8xf32> to vector<1x16x1x8xf32>
    tpu.vector_store %arg10[%c0_138, %c0_139, %c4_140, %c0_141], %141 {strides = array<i32>} : memref<1x16x8x8xf32, #tpu.memory_space<vmem>>, vector<1x16x1x8xf32>,
    %c0_142 = arith.constant 0 : index
    %c5_143 = arith.constant 5 : index
    %c0_144 = arith.constant 0 : index
    %c0_145 = arith.constant 0 : index
    %142 = vector.load %arg2[%c0_142, %c5_143, %c0_144, %c0_145] : memref<1x8x16x9xbf16, #tpu.memory_space<vmem>>, vector<1x1x16x9xbf16>
    %143 = vector.shape_cast %142 : vector<1x1x16x9xbf16> to vector<16x9xbf16>
    %c0_146 = arith.constant 0 : index
    %c5_147 = arith.constant 5 : index
    %c0_148 = arith.constant 0 : index
    %c0_149 = arith.constant 0 : index
    %144 = vector.load %arg4[%c0_146, %c5_147, %c0_148, %c0_149] : memref<1x8x16x9xbf16, #tpu.memory_space<vmem>>, vector<1x1x16x9xbf16>
    %145 = vector.shape_cast %144 : vector<1x1x16x9xbf16> to vector<16x9xbf16>
    %c0_150 = arith.constant 0 : index
    %c5_151 = arith.constant 5 : index
    %c0_152 = arith.constant 0 : index
    %c0_153 = arith.constant 0 : index
    %146 = vector.load %arg6[%c0_150, %c5_151, %c0_152, %c0_153] : memref<1x8x16x9xbf16, #tpu.memory_space<vmem>>, vector<1x1x16x9xbf16>
    %147 = vector.shape_cast %146 : vector<1x1x16x9xbf16> to vector<16x9xbf16>
    %c0_154 = arith.constant 0 : index
    %c5_155 = arith.constant 5 : index
    %c0_156 = arith.constant 0 : index
    %c0_157 = arith.constant 0 : index
    %148 = vector.load %arg7[%c0_154, %c5_155, %c0_156, %c0_157] : memref<1x8x16x9xbf16, #tpu.memory_space<vmem>>, vector<1x1x16x9xbf16>
    %149 = vector.shape_cast %148 : vector<1x1x16x9xbf16> to vector<16x9xbf16>
    %c0_158 = arith.constant 0 : index
    %c6 = arith.constant 6 : index
    %c0_159 = arith.constant 0 : index
    %c0_160 = arith.constant 0 : index
    %150 = vector.load %arg2[%c0_158, %c6, %c0_159, %c0_160] : memref<1x8x16x9xbf16, #tpu.memory_space<vmem>>, vector<1x1x16x9xbf16>
    %151 = vector.shape_cast %150 : vector<1x1x16x9xbf16> to vector<16x9xbf16>
    %c0_161 = arith.constant 0 : index
    %c6_162 = arith.constant 6 : index
    %c0_163 = arith.constant 0 : index
    %c0_164 = arith.constant 0 : index
    %152 = vector.load %arg4[%c0_161, %c6_162, %c0_163, %c0_164] : memref<1x8x16x9xbf16, #tpu.memory_space<vmem>>, vector<1x1x16x9xbf16>
    %153 = vector.shape_cast %152 : vector<1x1x16x9xbf16> to vector<16x9xbf16>
    %154 = vector.extract_strided_slice %143 {offsets = [0, 0], sizes = [16, 8], strides = [1, 1]} : vector<16x9xbf16> to vector<16x8xbf16>
    %155 = vector.extract_strided_slice %145 {offsets = [0, 0], sizes = [16, 8], strides = [1, 1]} : vector<16x9xbf16> to vector<16x8xbf16>
    %156 = vector.extract_strided_slice %143 {offsets = [0, 1], sizes = [16, 8], strides = [1, 1]} : vector<16x9xbf16> to vector<16x8xbf16>
    %157 = vector.extract_strided_slice %147 {offsets = [0, 0], sizes = [16, 8], strides = [1, 1]} : vector<16x9xbf16> to vector<16x8xbf16>
    %158 = vector.extract_strided_slice %149 {offsets = [0, 0], sizes = [16, 8], strides = [1, 1]} : vector<16x9xbf16> to vector<16x8xbf16>
    %159 = vector.extract_strided_slice %147 {offsets = [0, 1], sizes = [16, 8], strides = [1, 1]} : vector<16x9xbf16> to vector<16x8xbf16>
    %160 = vector.extract_strided_slice %151 {offsets = [0, 0], sizes = [16, 8], strides = [1, 1]} : vector<16x9xbf16> to vector<16x8xbf16>
    %161 = vector.extract_strided_slice %153 {offsets = [0, 0], sizes = [16, 8], strides = [1, 1]} : vector<16x9xbf16> to vector<16x8xbf16>
    %162 = vector.extract_strided_slice %151 {offsets = [0, 1], sizes = [16, 8], strides = [1, 1]} : vector<16x9xbf16> to vector<16x8xbf16>
    %163 = tpu.concatenate %154, %155, %156, %157, %158, %159, %160, %161, %162 in 0 : vector<16x8xbf16>, vector<16x8xbf16>, vector<16x8xbf16>, vector<16x8xbf16>, vector<16x8xbf16>, vector<16x8xbf16>, vector<16x8xbf16>, vector<16x8xbf16>, vector<16x8xbf16> -> vector<144x8xbf16>
    %cst_165 = arith.constant dense<0.000000e+00> : vector<16x8xf32>
    %164 = tpu.matmul %0, %163, %cst_165 {dimension_numbers = #tpu.dot_dimension_numbers<[1], [0], [0], [1], [0, 0, 1, 1], [], []>} : vector<16x144xbf16>, vector<144x8xbf16>, vector<16x8xf32> -> vector<16x8xf32>
    %165 = vector.broadcast %1 : vector<16x1xf32> to vector<16x8xf32>
    %166 = arith.addf %164, %165 : vector<16x8xf32>
    %c0_166 = arith.constant 0 : index
    %c0_167 = arith.constant 0 : index
    %c5_168 = arith.constant 5 : index
    %c0_169 = arith.constant 0 : index
    %167 = vector.load %arg10[%c0_166, %c0_167, %c5_168, %c0_169] : memref<1x16x8x8xf32, #tpu.memory_space<vmem>>, vector<1x16x1x8xf32>
    %168 = vector.shape_cast %167 : vector<1x16x1x8xf32> to vector<16x8xf32>
    %169 = vector.shape_cast %166 : vector<16x8xf32> to vector<1x16x1x8xf32>
    tpu.vector_store %arg10[%c0_166, %c0_167, %c5_168, %c0_169], %169 {strides = array<i32>} : memref<1x16x8x8xf32, #tpu.memory_space<vmem>>, vector<1x16x1x8xf32>,
    %c0_170 = arith.constant 0 : index
    %c6_171 = arith.constant 6 : index
    %c0_172 = arith.constant 0 : index
    %c0_173 = arith.constant 0 : index
    %170 = vector.load %arg2[%c0_170, %c6_171, %c0_172, %c0_173] : memref<1x8x16x9xbf16, #tpu.memory_space<vmem>>, vector<1x1x16x9xbf16>
    %171 = vector.shape_cast %170 : vector<1x1x16x9xbf16> to vector<16x9xbf16>
    %c0_174 = arith.constant 0 : index
    %c6_175 = arith.constant 6 : index
    %c0_176 = arith.constant 0 : index
    %c0_177 = arith.constant 0 : index
    %172 = vector.load %arg4[%c0_174, %c6_175, %c0_176, %c0_177] : memref<1x8x16x9xbf16, #tpu.memory_space<vmem>>, vector<1x1x16x9xbf16>
    %173 = vector.shape_cast %172 : vector<1x1x16x9xbf16> to vector<16x9xbf16>
    %c0_178 = arith.constant 0 : index
    %c6_179 = arith.constant 6 : index
    %c0_180 = arith.constant 0 : index
    %c0_181 = arith.constant 0 : index
    %174 = vector.load %arg6[%c0_178, %c6_179, %c0_180, %c0_181] : memref<1x8x16x9xbf16, #tpu.memory_space<vmem>>, vector<1x1x16x9xbf16>
    %175 = vector.shape_cast %174 : vector<1x1x16x9xbf16> to vector<16x9xbf16>
    %c0_182 = arith.constant 0 : index
    %c6_183 = arith.constant 6 : index
    %c0_184 = arith.constant 0 : index
    %c0_185 = arith.constant 0 : index
    %176 = vector.load %arg7[%c0_182, %c6_183, %c0_184, %c0_185] : memref<1x8x16x9xbf16, #tpu.memory_space<vmem>>, vector<1x1x16x9xbf16>
    %177 = vector.shape_cast %176 : vector<1x1x16x9xbf16> to vector<16x9xbf16>
    %c0_186 = arith.constant 0 : index
    %c7 = arith.constant 7 : index
    %c0_187 = arith.constant 0 : index
    %c0_188 = arith.constant 0 : index
    %178 = vector.load %arg2[%c0_186, %c7, %c0_187, %c0_188] : memref<1x8x16x9xbf16, #tpu.memory_space<vmem>>, vector<1x1x16x9xbf16>
    %179 = vector.shape_cast %178 : vector<1x1x16x9xbf16> to vector<16x9xbf16>
    %c0_189 = arith.constant 0 : index
    %c7_190 = arith.constant 7 : index
    %c0_191 = arith.constant 0 : index
    %c0_192 = arith.constant 0 : index
    %180 = vector.load %arg4[%c0_189, %c7_190, %c0_191, %c0_192] : memref<1x8x16x9xbf16, #tpu.memory_space<vmem>>, vector<1x1x16x9xbf16>
    %181 = vector.shape_cast %180 : vector<1x1x16x9xbf16> to vector<16x9xbf16>
    %182 = vector.extract_strided_slice %171 {offsets = [0, 0], sizes = [16, 8], strides = [1, 1]} : vector<16x9xbf16> to vector<16x8xbf16>
    %183 = vector.extract_strided_slice %173 {offsets = [0, 0], sizes = [16, 8], strides = [1, 1]} : vector<16x9xbf16> to vector<16x8xbf16>
    %184 = vector.extract_strided_slice %171 {offsets = [0, 1], sizes = [16, 8], strides = [1, 1]} : vector<16x9xbf16> to vector<16x8xbf16>
    %185 = vector.extract_strided_slice %175 {offsets = [0, 0], sizes = [16, 8], strides = [1, 1]} : vector<16x9xbf16> to vector<16x8xbf16>
    %186 = vector.extract_strided_slice %177 {offsets = [0, 0], sizes = [16, 8], strides = [1, 1]} : vector<16x9xbf16> to vector<16x8xbf16>
    %187 = vector.extract_strided_slice %175 {offsets = [0, 1], sizes = [16, 8], strides = [1, 1]} : vector<16x9xbf16> to vector<16x8xbf16>
    %188 = vector.extract_strided_slice %179 {offsets = [0, 0], sizes = [16, 8], strides = [1, 1]} : vector<16x9xbf16> to vector<16x8xbf16>
    %189 = vector.extract_strided_slice %181 {offsets = [0, 0], sizes = [16, 8], strides = [1, 1]} : vector<16x9xbf16> to vector<16x8xbf16>
    %190 = vector.extract_strided_slice %179 {offsets = [0, 1], sizes = [16, 8], strides = [1, 1]} : vector<16x9xbf16> to vector<16x8xbf16>
    %191 = tpu.concatenate %182, %183, %184, %185, %186, %187, %188, %189, %190 in 0 : vector<16x8xbf16>, vector<16x8xbf16>, vector<16x8xbf16>, vector<16x8xbf16>, vector<16x8xbf16>, vector<16x8xbf16>, vector<16x8xbf16>, vector<16x8xbf16>, vector<16x8xbf16> -> vector<144x8xbf16>
    %cst_193 = arith.constant dense<0.000000e+00> : vector<16x8xf32>
    %192 = tpu.matmul %0, %191, %cst_193 {dimension_numbers = #tpu.dot_dimension_numbers<[1], [0], [0], [1], [0, 0, 1, 1], [], []>} : vector<16x144xbf16>, vector<144x8xbf16>, vector<16x8xf32> -> vector<16x8xf32>
    %193 = vector.broadcast %1 : vector<16x1xf32> to vector<16x8xf32>
    %194 = arith.addf %192, %193 : vector<16x8xf32>
    %c0_194 = arith.constant 0 : index
    %c0_195 = arith.constant 0 : index
    %c6_196 = arith.constant 6 : index
    %c0_197 = arith.constant 0 : index
    %195 = vector.load %arg10[%c0_194, %c0_195, %c6_196, %c0_197] : memref<1x16x8x8xf32, #tpu.memory_space<vmem>>, vector<1x16x1x8xf32>
    %196 = vector.shape_cast %195 : vector<1x16x1x8xf32> to vector<16x8xf32>
    %197 = vector.shape_cast %194 : vector<16x8xf32> to vector<1x16x1x8xf32>
    tpu.vector_store %arg10[%c0_194, %c0_195, %c6_196, %c0_197], %197 {strides = array<i32>} : memref<1x16x8x8xf32, #tpu.memory_space<vmem>>, vector<1x16x1x8xf32>,
    %c0_198 = arith.constant 0 : index
    %c7_199 = arith.constant 7 : index
    %c0_200 = arith.constant 0 : index
    %c0_201 = arith.constant 0 : index
    %198 = vector.load %arg2[%c0_198, %c7_199, %c0_200, %c0_201] : memref<1x8x16x9xbf16, #tpu.memory_space<vmem>>, vector<1x1x16x9xbf16>
    %199 = vector.shape_cast %198 : vector<1x1x16x9xbf16> to vector<16x9xbf16>
    %c0_202 = arith.constant 0 : index
    %c7_203 = arith.constant 7 : index
    %c0_204 = arith.constant 0 : index
    %c0_205 = arith.constant 0 : index
    %200 = vector.load %arg4[%c0_202, %c7_203, %c0_204, %c0_205] : memref<1x8x16x9xbf16, #tpu.memory_space<vmem>>, vector<1x1x16x9xbf16>
    %201 = vector.shape_cast %200 : vector<1x1x16x9xbf16> to vector<16x9xbf16>
    %c0_206 = arith.constant 0 : index
    %c7_207 = arith.constant 7 : index
    %c0_208 = arith.constant 0 : index
    %c0_209 = arith.constant 0 : index
    %202 = vector.load %arg6[%c0_206, %c7_207, %c0_208, %c0_209] : memref<1x8x16x9xbf16, #tpu.memory_space<vmem>>, vector<1x1x16x9xbf16>
    %203 = vector.shape_cast %202 : vector<1x1x16x9xbf16> to vector<16x9xbf16>
    %c0_210 = arith.constant 0 : index
    %c7_211 = arith.constant 7 : index
    %c0_212 = arith.constant 0 : index
    %c0_213 = arith.constant 0 : index
    %204 = vector.load %arg7[%c0_210, %c7_211, %c0_212, %c0_213] : memref<1x8x16x9xbf16, #tpu.memory_space<vmem>>, vector<1x1x16x9xbf16>
    %205 = vector.shape_cast %204 : vector<1x1x16x9xbf16> to vector<16x9xbf16>
    %c0_214 = arith.constant 0 : index
    %c0_215 = arith.constant 0 : index
    %c0_216 = arith.constant 0 : index
    %c0_217 = arith.constant 0 : index
    %206 = vector.load %arg3[%c0_214, %c0_215, %c0_216, %c0_217] : memref<1x1x16x9xbf16, #tpu.memory_space<vmem>>, vector<1x1x16x9xbf16>
    %207 = vector.shape_cast %206 : vector<1x1x16x9xbf16> to vector<16x9xbf16>
    %c0_218 = arith.constant 0 : index
    %c0_219 = arith.constant 0 : index
    %c0_220 = arith.constant 0 : index
    %c0_221 = arith.constant 0 : index
    %208 = vector.load %arg5[%c0_218, %c0_219, %c0_220, %c0_221] : memref<1x1x16x9xbf16, #tpu.memory_space<vmem>>, vector<1x1x16x9xbf16>
    %209 = vector.shape_cast %208 : vector<1x1x16x9xbf16> to vector<16x9xbf16>
    %210 = vector.extract_strided_slice %199 {offsets = [0, 0], sizes = [16, 8], strides = [1, 1]} : vector<16x9xbf16> to vector<16x8xbf16>
    %211 = vector.extract_strided_slice %201 {offsets = [0, 0], sizes = [16, 8], strides = [1, 1]} : vector<16x9xbf16> to vector<16x8xbf16>
    %212 = vector.extract_strided_slice %199 {offsets = [0, 1], sizes = [16, 8], strides = [1, 1]} : vector<16x9xbf16> to vector<16x8xbf16>
    %213 = vector.extract_strided_slice %203 {offsets = [0, 0], sizes = [16, 8], strides = [1, 1]} : vector<16x9xbf16> to vector<16x8xbf16>
    %214 = vector.extract_strided_slice %205 {offsets = [0, 0], sizes = [16, 8], strides = [1, 1]} : vector<16x9xbf16> to vector<16x8xbf16>
    %215 = vector.extract_strided_slice %203 {offsets = [0, 1], sizes = [16, 8], strides = [1, 1]} : vector<16x9xbf16> to vector<16x8xbf16>
    %216 = vector.extract_strided_slice %207 {offsets = [0, 0], sizes = [16, 8], strides = [1, 1]} : vector<16x9xbf16> to vector<16x8xbf16>
    %217 = vector.extract_strided_slice %209 {offsets = [0, 0], sizes = [16, 8], strides = [1, 1]} : vector<16x9xbf16> to vector<16x8xbf16>
    %218 = vector.extract_strided_slice %207 {offsets = [0, 1], sizes = [16, 8], strides = [1, 1]} : vector<16x9xbf16> to vector<16x8xbf16>
    %219 = tpu.concatenate %210, %211, %212, %213, %214, %215, %216, %217, %218 in 0 : vector<16x8xbf16>, vector<16x8xbf16>, vector<16x8xbf16>, vector<16x8xbf16>, vector<16x8xbf16>, vector<16x8xbf16>, vector<16x8xbf16>, vector<16x8xbf16>, vector<16x8xbf16> -> vector<144x8xbf16>
    %cst_222 = arith.constant dense<0.000000e+00> : vector<16x8xf32>
    %220 = tpu.matmul %0, %219, %cst_222 {dimension_numbers = #tpu.dot_dimension_numbers<[1], [0], [0], [1], [0, 0, 1, 1], [], []>} : vector<16x144xbf16>, vector<144x8xbf16>, vector<16x8xf32> -> vector<16x8xf32>
    %221 = vector.broadcast %1 : vector<16x1xf32> to vector<16x8xf32>
    %222 = arith.addf %220, %221 : vector<16x8xf32>
    %c0_223 = arith.constant 0 : index
    %c0_224 = arith.constant 0 : index
    %c7_225 = arith.constant 7 : index
    %c0_226 = arith.constant 0 : index
    %223 = vector.load %arg10[%c0_223, %c0_224, %c7_225, %c0_226] : memref<1x16x8x8xf32, #tpu.memory_space<vmem>>, vector<1x16x1x8xf32>
    %224 = vector.shape_cast %223 : vector<1x16x1x8xf32> to vector<16x8xf32>
    %225 = vector.shape_cast %222 : vector<16x8xf32> to vector<1x16x1x8xf32>
    tpu.vector_store %arg10[%c0_223, %c0_224, %c7_225, %c0_226], %225 {strides = array<i32>} : memref<1x16x8x8xf32, #tpu.memory_space<vmem>>, vector<1x16x1x8xf32>,
    return
  }
  func.func @transform_0(%arg0: i32, %arg1: i32) -> (i32, i32, i32, i32) {
    %c0_i32 = arith.constant 0 : i32
    %c0_i32_0 = arith.constant 0 : i32
    %c0_i32_1 = arith.constant 0 : i32
    return %arg0, %arg1, %c0_i32, %c0_i32_0 : i32, i32, i32, i32
  }
  func.func @transform_1(%arg0: i32, %arg1: i32) -> (i32, i32, i32, i32) {
    %c1_i32 = arith.constant 1 : i32
    %0 = arith.addi %arg1, %c1_i32 : i32
    %c8_i32 = arith.constant 8 : i32
    %1 = arith.muli %0, %c8_i32 : i32
    %c0_i32 = arith.constant 0 : i32
    %c0_i32_0 = arith.constant 0 : i32
    %c0_i32_1 = arith.constant 0 : i32
    return %arg0, %1, %c0_i32, %c0_i32_0 : i32, i32, i32, i32
  }
  func.func @transform_2(%arg0: i32, %arg1: i32) -> (i32, i32, i32, i32) {
    %c0_i32 = arith.constant 0 : i32
    %c0_i32_0 = arith.constant 0 : i32
    %c0_i32_1 = arith.constant 0 : i32
    return %arg0, %arg1, %c0_i32, %c0_i32_0 : i32, i32, i32, i32
  }
  func.func @transform_3(%arg0: i32, %arg1: i32) -> (i32, i32, i32, i32) {
    %c1_i32 = arith.constant 1 : i32
    %0 = arith.addi %arg1, %c1_i32 : i32
    %c8_i32 = arith.constant 8 : i32
    %1 = arith.muli %0, %c8_i32 : i32
    %c0_i32 = arith.constant 0 : i32
    %c0_i32_0 = arith.constant 0 : i32
    %c0_i32_1 = arith.constant 0 : i32
    return %arg0, %1, %c0_i32, %c0_i32_0 : i32, i32, i32, i32
  }
  func.func @transform_4(%arg0: i32, %arg1: i32) -> (i32, i32, i32, i32) {
    %c0_i32 = arith.constant 0 : i32
    %c0_i32_0 = arith.constant 0 : i32
    %c0_i32_1 = arith.constant 0 : i32
    return %arg0, %arg1, %c0_i32, %c0_i32_0 : i32, i32, i32, i32
  }
  func.func @transform_5(%arg0: i32, %arg1: i32) -> (i32, i32, i32, i32) {
    %c0_i32 = arith.constant 0 : i32
    %c0_i32_0 = arith.constant 0 : i32
    %c0_i32_1 = arith.constant 0 : i32
    return %arg0, %arg1, %c0_i32, %c0_i32_0 : i32, i32, i32, i32
  }
  func.func @transform_6(%arg0: i32, %arg1: i32) -> (i32, i32) {
    %c0_i32 = arith.constant 0 : i32
    %c0_i32_0 = arith.constant 0 : i32
    %c0_i32_1 = arith.constant 0 : i32
    return %c0_i32, %c0_i32_0 : i32, i32
  }
  func.func @transform_7(%arg0: i32, %arg1: i32) -> (i32, i32) {
    %c0_i32 = arith.constant 0 : i32
    %c0_i32_0 = arith.constant 0 : i32
    %c0_i32_1 = arith.constant 0 : i32
    return %c0_i32, %c0_i32_0 : i32, i32
  }
  func.func @transform_8(%arg0: i32, %arg1: i32) -> (i32, i32, i32, i32) {
    %c0_i32 = arith.constant 0 : i32
    %c0_i32_0 = arith.constant 0 : i32
    %c0_i32_1 = arith.constant 0 : i32
    return %arg0, %c0_i32, %arg1, %c0_i32_0 : i32, i32, i32, i32
  }
}

</mosaic_0001>

<llo_original>
// kernel: downsample_pallas.1
$region0: #{downsample_pallas.1}
  #allocation0 [shape = 'u32[]', space=smem, size = 0x4, offset = 0x4, fixed_abs, tag = 'smem constant byte address 0x4 - core index']
  #allocation1 [shape = 'u32[72,128]{1,0:T(1,128)}', space=vmem, size = 0x9000, scoped, tag = 'internal scratch']
  %s0 = inlined_call_operand.vmem [shape: bf16[2,9,16,9], index: 0, kind: input, shape index: {}, may-alias: {0,1}]
  %s1 = inlined_call_operand.vmem [shape: bf16[2,9,16,9], index: 1, kind: input, shape index: {}, may-alias: {0,1}]
  %s2 = inlined_call_operand.vmem [shape: bf16[2,9,16,9], index: 2, kind: input, shape index: {}, may-alias: {2,3}]
  %s3 = inlined_call_operand.vmem [shape: bf16[2,9,16,9], index: 3, kind: input, shape index: {}, may-alias: {2,3}]
  %s4 = inlined_call_operand.vmem [shape: bf16[2,9,16,9], index: 4, kind: input, shape index: {}]
  %s5 = inlined_call_operand.vmem [shape: bf16[2,9,16,9], index: 5, kind: input, shape index: {}]
  %s6 = inlined_call_operand.vmem [shape: bf16[16,144], index: 6, kind: input, shape index: {}]
  %s7 = inlined_call_operand.vmem [shape: f32[16,1], index: 7, kind: input, shape index: {}]
  %s8 = inlined_call_operand.vmem [shape: f32[2,16,8,8], index: 8, kind: output, shape index: {}]
  %s9 = sld [smem:[#allocation0]]
  $region65: #{downsample_pallas.1} parent=0
    _
  %s11 = ssub.s32 1, %s9
  %s12 = scalar_select 0, %s11, %s9
  loop: start=0, step=1, limit=4
  $region2: #{downsample_pallas.1} parent=0 // loop_pre_header
    _
  $region3: #{downsample_pallas.1} parent=0 // loop_header
    %s14 = sphi 0, %s18
    %p15 = scmp.ge.s32.totalorder %s14, 4
    %s21 = sphi 0, %s33
    %s22 = sphi 0, %s29
    %s23 = sphi 0, %s21
    %s24 = sphi 0, %s22
    %s25 = sphi 0, %s23
    %s26 = sphi 0, %s24
    %s38 = sphi 0, %s40
    %s41 = sphi 0, %s38
    %s42 = sphi 0, %s41
    %s58 = sphi 0, %s42
    %s70 = sphi 0, %s72
    %s73 = sphi 0, %s70
    %s74 = sphi 0, %s73
    %s90 = sphi 0, %s74
    %s98 = sphi 0, %s100
    %s101 = sphi 0, %s98
    %s102 = sphi 0, %s101
    %s118 = sphi 0, %s102
    %s130 = sphi 0, %s132
    %s133 = sphi 0, %s130
    %s134 = sphi 0, %s133
    %s150 = sphi 0, %s134
    %s158 = sphi 0, %s160
    %s161 = sphi 0, %s158
    %s162 = sphi 0, %s161
    %s178 = sphi 0, %s162
    %s186 = sphi 0, %s188
    %s189 = sphi 0, %s186
    %s190 = sphi 0, %s189
    %s206 = sphi 0, %s190
    %s210 = sphi 0, %s210
    %s212 = sphi 0, %s210
    %s213 = sphi 0, %s212
    %s227 = sphi 0, %s213
    %s231 = sphi 0, %s231
    %s233 = sphi 0, %s231
    %s234 = sphi 0, %s233
    %s248 = sphi 0, %s234
    %s256 = sphi 0, %s258
    %s259 = sphi 0, %s256
    %s260 = sphi 0, %s259
    %s276 = sphi 0, %s260
  $region4: #{downsample_pallas.1} parent=0 // loop_header_branch
    %17 = sbr.rel (%p15) target = $region8
  $region5: #{downsample_pallas.1} parent=0 // loop_body
    %s19 = ssub.s32 %s14, 1
    %s20 = ssub.s32 %s14, 2
    %s27 = sadd.s32 1, %s22
    %p28 = scmp.ge.s32.totalorder %s27, 1
    %s29 = scalar_select %p28, 0, %s27
    %s30 = sadd.s32 1, %s21
    %s31 = scalar_select %p28, %s30, %s21
    %p32 = scmp.ge.s32.totalorder %s31, 2
    %s33 = scalar_select %p32, 0, %s31
    %s34 = ssub.s32 %s21, %s33
    %s35 = ssub.s32 %s22, %s29
    %s36 = sor.u32 %s34, %s35
    %p37 = scmp.eq.s32.totalorder %s36, 0
    %s39 = sadd.s32 %s38, 1
    %s40 = scalar_select %p37, %s38, %s39
    %p43 = pneg %p37
    %p44 = scmp.eq.s32.totalorder %s14, 1
    %p45 = por %p43, %p44
    %p46 = scmp.ne.s32.totalorder %s38, %s41
    %p47 = scmp.eq.s32.totalorder %s14, 0
    %p48 = por %p46, %p47
    %p49 = scmp.ne.s32.totalorder %s38, %s41
    %p50 = scmp.eq.s32.totalorder %s19, 1
    %p51 = por %p49, %p50
    %p52 = scmp.ne.s32.totalorder %s41, %s42
    %p53 = scmp.eq.s32.totalorder %s19, 0
    %p54 = por %p52, %p53
    %p55 = scmp.ne.s32.totalorder %s41, %s42
    %p56 = scmp.eq.s32.totalorder %s20, 1
    %p57 = por %p55, %p56
    %p59 = scmp.ne.s32.totalorder %s42, %s58
    %p60 = scmp.eq.s32.totalorder %s20, 0
    %p61 = por %p59, %p60
    %s62 = sadd.s32 %s22, 1
    %s63 = smul.u32 %s62, 8
    %s64 = sadd.s32 %s29, 1
    %s65 = smul.u32 %s64, 8
    %s66 = ssub.s32 %s21, %s33
    %s67 = ssub.s32 %s63, %s65
    %s68 = sor.u32 %s66, %s67
    %p69 = scmp.eq.s32.totalorder %s68, 0
    %s71 = sadd.s32 %s70, 1
    %s72 = scalar_select %p69, %s70, %s71
    %p75 = pneg %p69
    %p76 = scmp.eq.s32.totalorder %s14, 1
    %p77 = por %p75, %p76
    %p78 = scmp.ne.s32.totalorder %s70, %s73
    %p79 = scmp.eq.s32.totalorder %s14, 0
    %p80 = por %p78, %p79
    %p81 = scmp.ne.s32.totalorder %s70, %s73
    %p82 = scmp.eq.s32.totalorder %s19, 1
    %p83 = por %p81, %p82
    %p84 = scmp.ne.s32.totalorder %s73, %s74
    %p85 = scmp.eq.s32.totalorder %s19, 0
    %p86 = por %p84, %p85
    %p87 = scmp.ne.s32.totalorder %s73, %s74
    %p88 = scmp.eq.s32.totalorder %s20, 1
    %p89 = por %p87, %p88
    %p91 = scmp.ne.s32.totalorder %s74, %s90
    %p92 = scmp.eq.s32.totalorder %s20, 0
    %p93 = por %p91, %p92
    %s94 = ssub.s32 %s21, %s33
    %s95 = ssub.s32 %s22, %s29
    %s96 = sor.u32 %s94, %s95
    %p97 = scmp.eq.s32.totalorder %s96, 0
    %s99 = sadd.s32 %s98, 1
    %s100 = scalar_select %p97, %s98, %s99
    %p103 = pneg %p97
    %p104 = scmp.eq.s32.totalorder %s14, 1
    %p105 = por %p103, %p104
    %p106 = scmp.ne.s32.totalorder %s98, %s101
    %p107 = scmp.eq.s32.totalorder %s14, 0
    %p108 = por %p106, %p107
    %p109 = scmp.ne.s32.totalorder %s98, %s101
    %p110 = scmp.eq.s32.totalorder %s19, 1
    %p111 = por %p109, %p110
    %p112 = scmp.ne.s32.totalorder %s101, %s102
    %p113 = scmp.eq.s32.totalorder %s19, 0
    %p114 = por %p112, %p113
    %p115 = scmp.ne.s32.totalorder %s101, %s102
    %p116 = scmp.eq.s32.totalorder %s20, 1
    %p117 = por %p115, %p116
    %p119 = scmp.ne.s32.totalorder %s102, %s118
    %p120 = scmp.eq.s32.totalorder %s20, 0
    %p121 = por %p119, %p120
    %s122 = sadd.s32 %s22, 1
    %s123 = smul.u32 %s122, 8
    %s124 = sadd.s32 %s29, 1
    %s125 = smul.u32 %s124, 8
    %s126 = ssub.s32 %s21, %s33
    %s127 = ssub.s32 %s123, %s125
    %s128 = sor.u32 %s126, %s127
    %p129 = scmp.eq.s32.totalorder %s128, 0
    %s131 = sadd.s32 %s130, 1
    %s132 = scalar_select %p129, %s130, %s131
    %p135 = pneg %p129
    %p136 = scmp.eq.s32.totalorder %s14, 1
    %p137 = por %p135, %p136
    %p138 = scmp.ne.s32.totalorder %s130, %s133
    %p139 = scmp.eq.s32.totalorder %s14, 0
    %p140 = por %p138, %p139
    %p141 = scmp.ne.s32.totalorder %s130, %s133
    %p142 = scmp.eq.s32.totalorder %s19, 1
    %p143 = por %p141, %p142
    %p144 = scmp.ne.s32.totalorder %s133, %s134
    %p145 = scmp.eq.s32.totalorder %s19, 0
    %p146 = por %p144, %p145
    %p147 = scmp.ne.s32.totalorder %s133, %s134
    %p148 = scmp.eq.s32.totalorder %s20, 1
    %p149 = por %p147, %p148
    %p151 = scmp.ne.s32.totalorder %s134, %s150
    %p152 = scmp.eq.s32.totalorder %s20, 0
    %p153 = por %p151, %p152
    %s154 = ssub.s32 %s21, %s33
    %s155 = ssub.s32 %s22, %s29
    %s156 = sor.u32 %s154, %s155
    %p157 = scmp.eq.s32.totalorder %s156, 0
    %s159 = sadd.s32 %s158, 1
    %s160 = scalar_select %p157, %s158, %s159
    %p163 = pneg %p157
    %p164 = scmp.eq.s32.totalorder %s14, 1
    %p165 = por %p163, %p164
    %p166 = scmp.ne.s32.totalorder %s158, %s161
    %p167 = scmp.eq.s32.totalorder %s14, 0
    %p168 = por %p166, %p167
    %p169 = scmp.ne.s32.totalorder %s158, %s161
    %p170 = scmp.eq.s32.totalorder %s19, 1
    %p171 = por %p169, %p170
    %p172 = scmp.ne.s32.totalorder %s161, %s162
    %p173 = scmp.eq.s32.totalorder %s19, 0
    %p174 = por %p172, %p173
    %p175 = scmp.ne.s32.totalorder %s161, %s162
    %p176 = scmp.eq.s32.totalorder %s20, 1
    %p177 = por %p175, %p176
    %p179 = scmp.ne.s32.totalorder %s162, %s178
    %p180 = scmp.eq.s32.totalorder %s20, 0
    %p181 = por %p179, %p180
    %s182 = ssub.s32 %s21, %s33
    %s183 = ssub.s32 %s22, %s29
    %s184 = sor.u32 %s182, %s183
    %p185 = scmp.eq.s32.totalorder %s184, 0
    %s187 = sadd.s32 %s186, 1
    %s188 = scalar_select %p185, %s186, %s187
    %p191 = pneg %p185
    %p192 = scmp.eq.s32.totalorder %s14, 1
    %p193 = por %p191, %p192
    %p194 = scmp.ne.s32.totalorder %s186, %s189
    %p195 = scmp.eq.s32.totalorder %s14, 0
    %p196 = por %p194, %p195
    %p197 = scmp.ne.s32.totalorder %s186, %s189
    %p198 = scmp.eq.s32.totalorder %s19, 1
    %p199 = por %p197, %p198
    %p200 = scmp.ne.s32.totalorder %s189, %s190
    %p201 = scmp.eq.s32.totalorder %s19, 0
    %p202 = por %p200, %p201
    %p203 = scmp.ne.s32.totalorder %s189, %s190
    %p204 = scmp.eq.s32.totalorder %s20, 1
    %p205 = por %p203, %p204
    %p207 = scmp.ne.s32.totalorder %s190, %s206
    %p208 = scmp.eq.s32.totalorder %s20, 0
    %p209 = por %p207, %p208
    %s211 = sadd.s32 %s210, 1
    %p214 = scmp.eq.s32.totalorder %s14, 1
    %p215 = scmp.ne.s32.totalorder %s210, %s212
    %p216 = scmp.eq.s32.totalorder %s14, 0
    %p217 = por %p215, %p216
    %p218 = scmp.ne.s32.totalorder %s210, %s212
    %p219 = scmp.eq.s32.totalorder %s19, 1
    %p220 = por %p218, %p219
    %p221 = scmp.ne.s32.totalorder %s212, %s213
    %p222 = scmp.eq.s32.totalorder %s19, 0
    %p223 = por %p221, %p222
    %p224 = scmp.ne.s32.totalorder %s212, %s213
    %p225 = scmp.eq.s32.totalorder %s20, 1
    %p226 = por %p224, %p225
    %p228 = scmp.ne.s32.totalorder %s213, %s227
    %p229 = scmp.eq.s32.totalorder %s20, 0
    %p230 = por %p228, %p229
    %s232 = sadd.s32 %s231, 1
    %p235 = scmp.eq.s32.totalorder %s14, 1
    %p236 = scmp.ne.s32.totalorder %s231, %s233
    %p237 = scmp.eq.s32.totalorder %s14, 0
    %p238 = por %p236, %p237
    %p239 = scmp.ne.s32.totalorder %s231, %s233
    %p240 = scmp.eq.s32.totalorder %s19, 1
    %p241 = por %p239, %p240
    %p242 = scmp.ne.s32.totalorder %s233, %s234
    %p243 = scmp.eq.s32.totalorder %s19, 0
    %p244 = por %p242, %p243
    %p245 = scmp.ne.s32.totalorder %s233, %s234
    %p246 = scmp.eq.s32.totalorder %s20, 1
    %p247 = por %p245, %p246
    %p249 = scmp.ne.s32.totalorder %s234, %s248
    %p250 = scmp.eq.s32.totalorder %s20, 0
    %p251 = por %p249, %p250
    %s252 = ssub.s32 %s21, %s33
    %s253 = ssub.s32 %s22, %s29
    %s254 = sor.u32 %s252, %s253
    %p255 = scmp.eq.s32.totalorder %s254, 0
    %s257 = sadd.s32 %s256, 1
    %s258 = scalar_select %p255, %s256, %s257
    %p261 = pneg %p255
    %p262 = scmp.eq.s32.totalorder %s14, 1
    %p263 = por %p261, %p262
    %p264 = scmp.ne.s32.totalorder %s256, %s259
    %p265 = scmp.eq.s32.totalorder %s14, 0
    %p266 = por %p264, %p265
    %p267 = scmp.ne.s32.totalorder %s256, %s259
    %p268 = scmp.eq.s32.totalorder %s19, 1
    %p269 = por %p267, %p268
    %p270 = scmp.ne.s32.totalorder %s259, %s260
    %p271 = scmp.eq.s32.totalorder %s19, 0
    %p272 = por %p270, %p271
    %p273 = scmp.ne.s32.totalorder %s259, %s260
    %p274 = scmp.eq.s32.totalorder %s20, 1
    %p275 = por %p273, %p274
    %p277 = scmp.ne.s32.totalorder %s260, %s276
    %p278 = scmp.eq.s32.totalorder %s20, 0
    %p279 = por %p277, %p278
    %p280 = scmp.le.s32.totalorder 1, %s14
    %p281 = scmp.lt.s32.totalorder %s14, 3
    %p282 = pnand %p280, %p281
    %p283 = pneg %p282
    // Predicated region
    $region9: #{downsample_pallas.1} parent=5 // pred_check
      _
    $region10: #{downsample_pallas.1} parent=5 // pred_check_branch
      %285 = sbr.rel (%p282) target = $region12
    $region11: #{downsample_pallas.1} parent=5 // pred_region
      %s286 = ssub.s32 %s14, 1
      // Predicated region
      $region13: #{downsample_pallas.1} parent=11 // pred_check
        %p287 = pneg %p223
      $region14: #{downsample_pallas.1} parent=11 // pred_check_branch
        %289 = sbr.rel (%p287) target = $region16
      $region15: #{downsample_pallas.1} parent=11 // pred_region
        _
      $region16: #{downsample_pallas.1} parent=11 // pred_fallthru
        _
      // Predicated region
      $region17: #{downsample_pallas.1} parent=11 // pred_check
        %p290 = pneg %p244
      $region18: #{downsample_pallas.1} parent=11 // pred_check_branch
        %292 = sbr.rel (%p290) target = $region20
      $region19: #{downsample_pallas.1} parent=11 // pred_region
        _
      $region20: #{downsample_pallas.1} parent=11 // pred_fallthru
        _
    $region12: #{downsample_pallas.1} parent=5 // pred_fallthru
      _
    %p293 = scmp.lt.s32.totalorder %s14, 2
    // Predicated region
    $region21: #{downsample_pallas.1} parent=5 // pred_check
      %p294 = pneg %p293
    $region22: #{downsample_pallas.1} parent=5 // pred_check_branch
      %296 = sbr.rel (%p294) target = $region24
    $region23: #{downsample_pallas.1} parent=5 // pred_region
      // Predicated region
      $region25: #{downsample_pallas.1} parent=23 // pred_check
        %p297 = pneg %p48
      $region26: #{downsample_pallas.1} parent=23 // pred_check_branch
        %299 = sbr.rel (%p297) target = $region28
      $region27: #{downsample_pallas.1} parent=23 // pred_region
        %s300 = smul.u32 8, %s22
        %s301 = ssub.s32 9, %s300
        %p302 = scmp.lt.s32.totalorder %s301, 8
        %s303 = scalar_select %p302, %s301, 8
        %s304 = smul.u32 4, %s303
        %s305 = smul.u32 %s304, 2
        %p306 = scmp.lt.s32.totalorder %s21, 1
        %s307 = scalar_select %p306, %s21, 1
        %p308 = scmp.lt.s32.totalorder %s300, 8
        %s309 = scalar_select %p308, %s300, 8
        %s310 = smul.addr %s309, 2
        %s311 = smul.addr %s307, 18
        %s312 = sadd.s32 %s310, %s311
        %s313 = smul.addr %s312, 4
        %s314 = scalar_lea.vmem %s0, %s313
        %s315 = smul.u32 8, %s22
        %s316 = ssub.s32 9, %s315
        %p317 = scmp.lt.s32.totalorder %s316, 8
        %s318 = scalar_select %p317, %s316, 8
        %s319 = smul.u32 4, %s318
        %s320 = smul.u32 %s319, 2
      $region28: #{downsample_pallas.1} parent=23 // pred_fallthru
        _
      // Predicated region
      $region29: #{downsample_pallas.1} parent=23 // pred_check
        %p321 = pneg %p80
      $region30: #{downsample_pallas.1} parent=23 // pred_check_branch
        %323 = sbr.rel (%p321) target = $region32
      $region31: #{downsample_pallas.1} parent=23 // pred_region
        %s324 = sadd.s32 %s22, 1
        %s325 = smul.u32 %s324, 8
        %p326 = scmp.lt.s32.totalorder %s21, 1
        %s327 = scalar_select %p326, %s21, 1
        %p328 = scmp.lt.s32.totalorder %s325, 8
        %s329 = scalar_select %p328, %s325, 8
        %s330 = smul.addr %s329, 2
        %s331 = smul.addr %s327, 18
        %s332 = sadd.s32 %s330, %s331
        %s333 = smul.addr %s332, 4
        %s334 = scalar_lea.vmem %s1, %s333
        %s335 = sadd.s32 %s22, 1
        %s336 = smul.u32 %s335, 8
      $region32: #{downsample_pallas.1} parent=23 // pred_fallthru
        _
      // Predicated region
      $region33: #{downsample_pallas.1} parent=23 // pred_check
        %p337 = pneg %p108
      $region34: #{downsample_pallas.1} parent=23 // pred_check_branch
        %339 = sbr.rel (%p337) target = $region36
      $region35: #{downsample_pallas.1} parent=23 // pred_region
        %s340 = smul.u32 8, %s22
        %s341 = ssub.s32 9, %s340
        %p342 = scmp.lt.s32.totalorder %s341, 8
        %s343 = scalar_select %p342, %s341, 8
        %s344 = smul.u32 4, %s343
        %s345 = smul.u32 %s344, 2
        %p346 = scmp.lt.s32.totalorder %s21, 1
        %s347 = scalar_select %p346, %s21, 1
        %p348 = scmp.lt.s32.totalorder %s340, 8
        %s349 = scalar_select %p348, %s340, 8
        %s350 = smul.addr %s349, 2
        %s351 = smul.addr %s347, 18
        %s352 = sadd.s32 %s350, %s351
        %s353 = smul.addr %s352, 4
        %s354 = scalar_lea.vmem %s2, %s353
        %s355 = smul.u32 8, %s22
        %s356 = ssub.s32 9, %s355
        %p357 = scmp.lt.s32.totalorder %s356, 8
        %s358 = scalar_select %p357, %s356, 8
        %s359 = smul.u32 4, %s358
        %s360 = smul.u32 %s359, 2
      $region36: #{downsample_pallas.1} parent=23 // pred_fallthru
        _
      // Predicated region
      $region37: #{downsample_pallas.1} parent=23 // pred_check
        %p361 = pneg %p140
      $region38: #{downsample_pallas.1} parent=23 // pred_check_branch
        %363 = sbr.rel (%p361) target = $region40
      $region39: #{downsample_pallas.1} parent=23 // pred_region
        %s364 = sadd.s32 %s22, 1
        %s365 = smul.u32 %s364, 8
        %p366 = scmp.lt.s32.totalorder %s21, 1
        %s367 = scalar_select %p366, %s21, 1
        %p368 = scmp.lt.s32.totalorder %s365, 8
        %s369 = scalar_select %p368, %s365, 8
        %s370 = smul.addr %s369, 2
        %s371 = smul.addr %s367, 18
        %s372 = sadd.s32 %s370, %s371
        %s373 = smul.addr %s372, 4
        %s374 = scalar_lea.vmem %s3, %s373
        %s375 = sadd.s32 %s22, 1
        %s376 = smul.u32 %s375, 8
      $region40: #{downsample_pallas.1} parent=23 // pred_fallthru
        _
      // Predicated region
      $region41: #{downsample_pallas.1} parent=23 // pred_check
        %p377 = pneg %p168
      $region42: #{downsample_pallas.1} parent=23 // pred_check_branch
        %379 = sbr.rel (%p377) target = $region44
      $region43: #{downsample_pallas.1} parent=23 // pred_region
        %s380 = smul.u32 8, %s22
        %s381 = ssub.s32 9, %s380
        %p382 = scmp.lt.s32.totalorder %s381, 8
        %s383 = scalar_select %p382, %s381, 8
        %s384 = smul.u32 4, %s383
        %s385 = smul.u32 %s384, 2
        %p386 = scmp.lt.s32.totalorder %s21, 1
        %s387 = scalar_select %p386, %s21, 1
        %p388 = scmp.lt.s32.totalorder %s380, 8
        %s389 = scalar_select %p388, %s380, 8
        %s390 = smul.addr %s389, 2
        %s391 = smul.addr %s387, 18
        %s392 = sadd.s32 %s390, %s391
        %s393 = smul.addr %s392, 4
        %s394 = scalar_lea.vmem %s4, %s393
        %s395 = smul.u32 8, %s22
        %s396 = ssub.s32 9, %s395
        %p397 = scmp.lt.s32.totalorder %s396, 8
        %s398 = scalar_select %p397, %s396, 8
        %s399 = smul.u32 4, %s398
        %s400 = smul.u32 %s399, 2
      $region44: #{downsample_pallas.1} parent=23 // pred_fallthru
        _
      // Predicated region
      $region45: #{downsample_pallas.1} parent=23 // pred_check
        %p401 = pneg %p196
      $region46: #{downsample_pallas.1} parent=23 // pred_check_branch
        %403 = sbr.rel (%p401) target = $region48
      $region47: #{downsample_pallas.1} parent=23 // pred_region
        %s404 = smul.u32 8, %s22
        %s405 = ssub.s32 9, %s404
        %p406 = scmp.lt.s32.totalorder %s405, 8
        %s407 = scalar_select %p406, %s405, 8
        %s408 = smul.u32 4, %s407
        %s409 = smul.u32 %s408, 2
        %p410 = scmp.lt.s32.totalorder %s21, 1
        %s411 = scalar_select %p410, %s21, 1
        %p412 = scmp.lt.s32.totalorder %s404, 8
        %s413 = scalar_select %p412, %s404, 8
        %s414 = smul.addr %s413, 2
        %s415 = smul.addr %s411, 18
        %s416 = sadd.s32 %s414, %s415
        %s417 = smul.addr %s416, 4
        %s418 = scalar_lea.vmem %s5, %s417
        %s419 = smul.u32 8, %s22
        %s420 = ssub.s32 9, %s419
        %p421 = scmp.lt.s32.totalorder %s420, 8
        %s422 = scalar_select %p421, %s420, 8
        %s423 = smul.u32 4, %s422
        %s424 = smul.u32 %s423, 2
      $region48: #{downsample_pallas.1} parent=23 // pred_fallthru
        _
    $region24: #{downsample_pallas.1} parent=5 // pred_fallthru
      _
    %p425 = scmp.le.s32.totalorder 1, %s14
    %p426 = scmp.lt.s32.totalorder %s14, 3
    %p427 = pnand %p425, %p426
    %p428 = pneg %p427
    // Predicated region
    $region49: #{downsample_pallas.1} parent=5 // pred_check
      _
    $region50: #{downsample_pallas.1} parent=5 // pred_check_branch
      %430 = sbr.rel (%p427) target = $region52
    $region51: #{downsample_pallas.1} parent=5 // pred_region
      %s431 = ssub.s32 %s14, 1
      %s432 = smul.u32 8, %s24
      %s433 = ssub.s32 9, %s432
      %p434 = scmp.lt.s32.totalorder %s433, 8
      %s435 = scalar_select %p434, %s433, 8
      %s436 = smul.u32 4, %s435
      %s437 = smul.u32 %s436, 2
      %p438 = scmp.lt.s32.totalorder %s23, 1
      %s439 = scalar_select %p438, %s23, 1
      %p440 = scmp.lt.s32.totalorder %s432, 8
      %s441 = scalar_select %p440, %s432, 8
      %s442 = smul.addr %s441, 2
      %s443 = smul.addr %s439, 18
      %s444 = sadd.s32 %s442, %s443
      %s445 = smul.addr %s444, 4
      %s446 = scalar_lea.vmem %s0, %s445
      %p447 = pneg %p54
      %p448 = pneg %p51
      %s449 = sadd.s32 %s24, 1
      %s450 = smul.u32 %s449, 8
      %p451 = scmp.lt.s32.totalorder %s23, 1
      %s452 = scalar_select %p451, %s23, 1
      %p453 = scmp.lt.s32.totalorder %s450, 8
      %s454 = scalar_select %p453, %s450, 8
      %s455 = smul.addr %s454, 2
      %s456 = smul.addr %s452, 18
      %s457 = sadd.s32 %s455, %s456
      %s458 = smul.addr %s457, 4
      %s459 = scalar_lea.vmem %s1, %s458
      %p460 = pneg %p86
      %p461 = pneg %p83
      %s462 = smul.u32 8, %s24
      %s463 = ssub.s32 9, %s462
      %p464 = scmp.lt.s32.totalorder %s463, 8
      %s465 = scalar_select %p464, %s463, 8
      %s466 = smul.u32 4, %s465
      %s467 = smul.u32 %s466, 2
      %p468 = scmp.lt.s32.totalorder %s23, 1
      %s469 = scalar_select %p468, %s23, 1
      %p470 = scmp.lt.s32.totalorder %s462, 8
      %s471 = scalar_select %p470, %s462, 8
      %s472 = smul.addr %s471, 2
      %s473 = smul.addr %s469, 18
      %s474 = sadd.s32 %s472, %s473
      %s475 = smul.addr %s474, 4
      %s476 = scalar_lea.vmem %s2, %s475
      %p477 = pneg %p114
      %p478 = pneg %p111
      %s479 = sadd.s32 %s24, 1
      %s480 = smul.u32 %s479, 8
      %p481 = scmp.lt.s32.totalorder %s23, 1
      %s482 = scalar_select %p481, %s23, 1
      %p483 = scmp.lt.s32.totalorder %s480, 8
      %s484 = scalar_select %p483, %s480, 8
      %s485 = smul.addr %s484, 2
      %s486 = smul.addr %s482, 18
      %s487 = sadd.s32 %s485, %s486
      %s488 = smul.addr %s487, 4
      %s489 = scalar_lea.vmem %s3, %s488
      %p490 = pneg %p146
      %p491 = pneg %p143
      %s492 = smul.u32 8, %s24
      %s493 = ssub.s32 9, %s492
      %p494 = scmp.lt.s32.totalorder %s493, 8
      %s495 = scalar_select %p494, %s493, 8
      %s496 = smul.u32 4, %s495
      %s497 = smul.u32 %s496, 2
      %p498 = scmp.lt.s32.totalorder %s23, 1
      %s499 = scalar_select %p498, %s23, 1
      %p500 = scmp.lt.s32.totalorder %s492, 8
      %s501 = scalar_select %p500, %s492, 8
      %s502 = smul.addr %s501, 2
      %s503 = smul.addr %s499, 18
      %s504 = sadd.s32 %s502, %s503
      %s505 = smul.addr %s504, 4
      %s506 = scalar_lea.vmem %s4, %s505
      %p507 = pneg %p174
      %p508 = pneg %p171
      %s509 = smul.u32 8, %s24
      %s510 = ssub.s32 9, %s509
      %p511 = scmp.lt.s32.totalorder %s510, 8
      %s512 = scalar_select %p511, %s510, 8
      %s513 = smul.u32 4, %s512
      %s514 = smul.u32 %s513, 2
      %p515 = scmp.lt.s32.totalorder %s23, 1
      %s516 = scalar_select %p515, %s23, 1
      %p517 = scmp.lt.s32.totalorder %s509, 8
      %s518 = scalar_select %p517, %s509, 8
      %s519 = smul.addr %s518, 2
      %s520 = smul.addr %s516, 18
      %s521 = sadd.s32 %s519, %s520
      %s522 = smul.addr %s521, 4
      %s523 = scalar_lea.vmem %s5, %s522
      %p524 = pneg %p202
      %p525 = pneg %p199
      %p526 = pneg %p223
      %p527 = pneg %p220
      %p528 = pneg %p244
      %p529 = pneg %p241
      %p530 = pneg %p272
      %p531 = pneg %p269
      %p532 = scmp.lt.s32.totalorder %s23, 1
      %s533 = scalar_select %p532, %s23, 1
      %p534 = scmp.lt.s32.totalorder %s24, 0
      %s535 = scalar_select %p534, %s24, 0
      %s536 = smul.addr %s533, 16
      %s537 = sadd.s32 %s535, %s536
      %s538 = smul.addr %s537, 8
      %s539 = scalar_lea.vmem %s8, %s538
      %s540 = smul.u32 8, %s24
      %s541 = ssub.s32 9, %s540
      %p542 = scmp.lt.s32.totalorder %s541, 8
      %s543 = scalar_select %p542, %s541, 8
      %s544 = smul.u32 4, %s543
      %s545 = smul.u32 %s544, 2
      %p546 = scmp.lt.s32.totalorder %s23, 1
      %s547 = scalar_select %p546, %s23, 1
      %p548 = scmp.lt.s32.totalorder %s540, 8
      %s549 = scalar_select %p548, %s540, 8
      %s550 = smul.addr %s549, 2
      %s551 = smul.addr %s547, 18
      %s552 = sadd.s32 %s550, %s551
      %s553 = smul.addr %s552, 4
      %s554 = scalar_lea.vmem %s0, %s553
      %s555 = smul.u32 8, %s24
      %s556 = ssub.s32 9, %s555
      %p557 = scmp.lt.s32.totalorder %s556, 8
      %s558 = scalar_select %p557, %s556, 8
      %s559 = smul.u32 4, %s558
      %s560 = smul.u32 %s559, 2
      %s561 = sadd.s32 %s24, 1
      %s562 = smul.u32 %s561, 8
      %p563 = scmp.lt.s32.totalorder %s23, 1
      %s564 = scalar_select %p563, %s23, 1
      %p565 = scmp.lt.s32.totalorder %s562, 8
      %s566 = scalar_select %p565, %s562, 8
      %s567 = smul.addr %s566, 2
      %s568 = smul.addr %s564, 18
      %s569 = sadd.s32 %s567, %s568
      %s570 = smul.addr %s569, 4
      %s571 = scalar_lea.vmem %s1, %s570
      %s572 = sadd.s32 %s24, 1
      %s573 = smul.u32 %s572, 8
      %s574 = smul.u32 8, %s24
      %s575 = ssub.s32 9, %s574
      %p576 = scmp.lt.s32.totalorder %s575, 8
      %s577 = scalar_select %p576, %s575, 8
      %s578 = smul.u32 4, %s577
      %s579 = smul.u32 %s578, 2
      %p580 = scmp.lt.s32.totalorder %s23, 1
      %s581 = scalar_select %p580, %s23, 1
      %p582 = scmp.lt.s32.totalorder %s574, 8
      %s583 = scalar_select %p582, %s574, 8
      %s584 = smul.addr %s583, 2
      %s585 = smul.addr %s581, 18
      %s586 = sadd.s32 %s584, %s585
      %s587 = smul.addr %s586, 4
      %s588 = scalar_lea.vmem %s2, %s587
      %s589 = smul.u32 8, %s24
      %s590 = ssub.s32 9, %s589
      %p591 = scmp.lt.s32.totalorder %s590, 8
      %s592 = scalar_select %p591, %s590, 8
      %s593 = smul.u32 4, %s592
      %s594 = smul.u32 %s593, 2
      %s595 = sadd.s32 %s24, 1
      %s596 = smul.u32 %s595, 8
      %p597 = scmp.lt.s32.totalorder %s23, 1
      %s598 = scalar_select %p597, %s23, 1
      %p599 = scmp.lt.s32.totalorder %s596, 8
      %s600 = scalar_select %p599, %s596, 8
      %s601 = smul.addr %s600, 2
      %s602 = smul.addr %s598, 18
      %s603 = sadd.s32 %s601, %s602
      %s604 = smul.addr %s603, 4
      %s605 = scalar_lea.vmem %s3, %s604
      %s606 = sadd.s32 %s24, 1
      %s607 = smul.u32 %s606, 8
      %s608 = smul.u32 8, %s24
      %s609 = ssub.s32 9, %s608
      %p610 = scmp.lt.s32.totalorder %s609, 8
      %s611 = scalar_select %p610, %s609, 8
      %s612 = smul.u32 4, %s611
      %s613 = smul.u32 %s612, 2
      %p614 = scmp.lt.s32.totalorder %s23, 1
      %s615 = scalar_select %p614, %s23, 1
      %p616 = scmp.lt.s32.totalorder %s608, 8
      %s617 = scalar_select %p616, %s608, 8
      %s618 = smul.addr %s617, 2
      %s619 = smul.addr %s615, 18
      %s620 = sadd.s32 %s618, %s619
      %s621 = smul.addr %s620, 4
      %s622 = scalar_lea.vmem %s4, %s621
      %s623 = smul.u32 8, %s24
      %s624 = ssub.s32 9, %s623
      %p625 = scmp.lt.s32.totalorder %s624, 8
      %s626 = scalar_select %p625, %s624, 8
      %s627 = smul.u32 4, %s626
      %s628 = smul.u32 %s627, 2
      %s629 = smul.u32 8, %s24
      %s630 = ssub.s32 9, %s629
      %p631 = scmp.lt.s32.totalorder %s630, 8
      %s632 = scalar_select %p631, %s630, 8
      %s633 = smul.u32 4, %s632
      %s634 = smul.u32 %s633, 2
      %p635 = scmp.lt.s32.totalorder %s23, 1
      %s636 = scalar_select %p635, %s23, 1
      %p637 = scmp.lt.s32.totalorder %s629, 8
      %s638 = scalar_select %p637, %s629, 8
      %s639 = smul.addr %s638, 2
      %s640 = smul.addr %s636, 18
      %s641 = sadd.s32 %s639, %s640
      %s642 = smul.addr %s641, 4
      %s643 = scalar_lea.vmem %s5, %s642
      %s644 = smul.u32 8, %s24
      %s645 = ssub.s32 9, %s644
      %p646 = scmp.lt.s32.totalorder %s645, 8
      %s647 = scalar_select %p646, %s645, 8
      %s648 = smul.u32 4, %s647
      %s649 = smul.u32 %s648, 2
      %p650 = scmp.lt.s32.totalorder %s23, 1
      %s651 = scalar_select %p650, %s23, 1
      %p652 = scmp.lt.s32.totalorder %s24, 0
      %s653 = scalar_select %p652, %s24, 0
      %s654 = smul.addr %s651, 16
      %s655 = sadd.s32 %s653, %s654
      %s656 = smul.addr %s655, 8
      %s657 = scalar_lea.vmem %s8, %s656
      %v659 = vld [vmem:[%s6] sm:$0xff]
      %v660 = vld [vmem:[%s6 + $0x8] sm:$0xff]
      %v661 = vld [vmem:[%s7] sm:$0xff]
      %v662 = vld [vmem:[%s7 + $0x8] sm:$0xff]
      %v663 = vld [vmem:[%s554] sm:$0xf]
      %v664 = vld [vmem:[%s554 + $0x4] sm:$0xf]
      %v665 = vld [vmem:[%s588] sm:$0xf]
      %v666 = vld [vmem:[%s588 + $0x4] sm:$0xf]
      %v667 = vld [vmem:[%s622] sm:$0xf]
      %v668 = vld [vmem:[%s622 + $0x4] sm:$0xf]
      %v669 = vld [vmem:[%s643] sm:$0xf]
      %v670 = vld [vmem:[%s643 + $0x4] sm:$0xf]
      %s671 = scalar_lea.vmem %s554, 8
      %v672 = vld [vmem:[%s671] sm:$0xf]
      %v673 = vld [vmem:[%s671 + $0x4] sm:$0xf]
      %s674 = scalar_lea.vmem %s588, 8
      %v675 = vld [vmem:[%s674] sm:$0xf]
      %v676 = vld [vmem:[%s674 + $0x4] sm:$0xf]
      %v679 = vunpack.c.l.b16 %v663
      %v680 = vunpack.c.l.b16 %v664
      %v681 = vpack.c.b16 %v680, %v679
      %v685 = vunpack.c.l.b16 %v665
      %v686 = vunpack.c.l.b16 %v666
      %v687 = vpack.c.b16 %v686, %v685
      %689 = vrot.lane.b32.xlu0 %v681, 127
      %v690 = vpop.permute.xlu0 %689
      %v694 = vunpack.c.l.b16 %v667
      %v695 = vunpack.c.l.b16 %v668
      %v696 = vpack.c.b16 %v695, %v694
      %v700 = vunpack.c.l.b16 %v669
      %v701 = vunpack.c.l.b16 %v670
      %v702 = vpack.c.b16 %v701, %v700
      %704 = vrot.lane.b32.xlu0 %v696, 127
      %v705 = vpop.permute.xlu0 %704
      %v709 = vunpack.c.l.b16 %v672
      %v710 = vunpack.c.l.b16 %v673
      %v711 = vpack.c.b16 %v710, %v709
      %v715 = vunpack.c.l.b16 %v675
      %v716 = vunpack.c.l.b16 %v676
      %v717 = vpack.c.b16 %v716, %v715
      %719 = vrot.lane.b32.xlu0 %v711, 127
      %v720 = vpop.permute.xlu0 %719
      %723 = vset.pattern.permute.xlu0 0
      %724 = vperm.xlu0 %723, %v661
      %v725 = vpop.permute.xlu0 %724
      %728 = vset.pattern.permute.xlu0 0
      %729 = vperm.xlu0 %728, %v662
      %v730 = vpop.permute.xlu0 %729
      %v734 = vunpack.c.l.b16 %v659
      %v735 = vunpack.c.h.b16 %v659
      %v736 = vunpack.c.l.b16 %v660
      %v737 = vunpack.c.h.b16 %v660
      %v738 = vpack.c.b16 %v736, %v734
      %v739 = vpack.c.b16 %v737, %v735
      %vm741 = vcmask 130048
      %v743 = vsel %vm741, %v739, 0
      %745 = vmatpush.bf16.msra.mxu0 %v717
      %746 = vmatpush.bf16.msra.mxu0 %v711
      %747 = vmatpush.bf16.msra.mxu0 %v705
      %748 = vmatpush.bf16.msra.mxu0 %v702
      %749 = vmatpush.bf16.msra.mxu0 %v696
      %750 = vmatpush.bf16.msra.mxu0 %v690
      %751 = vmatpush.bf16.msra.mxu0 %v687
      %752 = vmatpush.bf16.msra.mxu0 %v681
      %753 = vmatmul.bf16.gmra.mxu0 %v738
      %v754 = vpop.f32.mrf.mxu0
      %v755 = vadd.f32 %v725, %v754
      %v756 = vpop.f32.mrf.mxu0
      %v757 = vadd.f32 %v730, %v756
      %758 = vdwg.mxu0
      %759 = vmatpush.bf16.msra.mxu0 0
      %760 = vmatpush.bf16.msra.mxu0 0
      %761 = vmatpush.bf16.msra.mxu0 0
      %762 = vmatpush.bf16.msra.mxu0 0
      %763 = vmatpush.bf16.msra.mxu0 0
      %764 = vmatpush.bf16.msra.mxu0 0
      %765 = vmatpush.bf16.msra.mxu0 0
      %766 = vmatpush.bf16.msra.mxu0 %v720
      %767 = vmatmul.bf16.gmra.mxu0 %v743
      %v768 = vpop.f32.mrf.mxu0
      %v769 = vadd.f32 %v755, %v768
      %v770 = vpop.f32.mrf.mxu0
      %v771 = vadd.f32 %v757, %v770
      %772 = vdwg.mxu0
      %v775 = vrot.slane %v769, 1
      %v776 = vrot.slane %v769, 2
      %v777 = vrot.slane %v769, 3
      %v778 = vrot.slane %v769, 4
      %v779 = vrot.slane %v769, 5
      %v780 = vrot.slane %v769, 6
      %v781 = vrot.slane %v769, 7
      %v782 = vrot.slane %v771, 1
      %v783 = vrot.slane %v771, 2
      %v784 = vrot.slane %v771, 3
      %v785 = vrot.slane %v771, 4
      %v786 = vrot.slane %v771, 5
      %v787 = vrot.slane %v771, 6
      %v788 = vrot.slane %v771, 7
      %vm803 = vcmask 57344
      %804 = vst.msk [vmem:[%s657] sm:$0x1] %vm803, %v769
      %805 = vst.msk [vmem:[%s657 + $0x8] sm:$0x1] %vm803, %v775
      %806 = vst.msk [vmem:[%s657 + $0x10] sm:$0x1] %vm803, %v776
      %807 = vst.msk [vmem:[%s657 + $0x18] sm:$0x1] %vm803, %v777
      %808 = vst.msk [vmem:[%s657 + $0x20] sm:$0x1] %vm803, %v778
      %809 = vst.msk [vmem:[%s657 + $0x28] sm:$0x1] %vm803, %v779
      %810 = vst.msk [vmem:[%s657 + $0x30] sm:$0x1] %vm803, %v780
      %811 = vst.msk [vmem:[%s657 + $0x38] sm:$0x1] %vm803, %v781
      %812 = vst.msk [vmem:[%s657 + $0x40] sm:$0x1] %vm803, %v771
      %813 = vst.msk [vmem:[%s657 + $0x48] sm:$0x1] %vm803, %v782
      %814 = vst.msk [vmem:[%s657 + $0x50] sm:$0x1] %vm803, %v783
      %815 = vst.msk [vmem:[%s657 + $0x58] sm:$0x1] %vm803, %v784
      %816 = vst.msk [vmem:[%s657 + $0x60] sm:$0x1] %vm803, %v785
      %817 = vst.msk [vmem:[%s657 + $0x68] sm:$0x1] %vm803, %v786
      %818 = vst.msk [vmem:[%s657 + $0x70] sm:$0x1] %vm803, %v787
      %819 = vst.msk [vmem:[%s657 + $0x78] sm:$0x1] %vm803, %v788
      %v820 = vld [vmem:[%s671] sm:$0xf]
      %v821 = vld [vmem:[%s671 + $0x4] sm:$0xf]
      %v822 = vld [vmem:[%s674] sm:$0xf]
      %v823 = vld [vmem:[%s674 + $0x4] sm:$0xf]
      %s824 = scalar_lea.vmem %s622, 8
      %v825 = vld [vmem:[%s824] sm:$0xf]
      %v826 = vld [vmem:[%s824 + $0x4] sm:$0xf]
      %s827 = scalar_lea.vmem %s643, 8
      %v828 = vld [vmem:[%s827] sm:$0xf]
      %v829 = vld [vmem:[%s827 + $0x4] sm:$0xf]
      %s830 = scalar_lea.vmem %s554, 16
      %v831 = vld [vmem:[%s830] sm:$0xf]
      %v832 = vld [vmem:[%s830 + $0x4] sm:$0xf]
      %s833 = scalar_lea.vmem %s588, 16
      %v834 = vld [vmem:[%s833] sm:$0xf]
      %v835 = vld [vmem:[%s833 + $0x4] sm:$0xf]
      %v838 = vunpack.c.l.b16 %v820
      %v839 = vunpack.c.l.b16 %v821
      %v840 = vpack.c.b16 %v839, %v838
      %v844 = vunpack.c.l.b16 %v822
      %v845 = vunpack.c.l.b16 %v823
      %v846 = vpack.c.b16 %v845, %v844
      %848 = vrot.lane.b32.xlu0 %v840, 127
      %v849 = vpop.permute.xlu0 %848
      %v853 = vunpack.c.l.b16 %v825
      %v854 = vunpack.c.l.b16 %v826
      %v855 = vpack.c.b16 %v854, %v853
      %v859 = vunpack.c.l.b16 %v828
      %v860 = vunpack.c.l.b16 %v829
      %v861 = vpack.c.b16 %v860, %v859
      %863 = vrot.lane.b32.xlu0 %v855, 127
      %v864 = vpop.permute.xlu0 %863
      %v868 = vunpack.c.l.b16 %v831
      %v869 = vunpack.c.l.b16 %v832
      %v870 = vpack.c.b16 %v869, %v868
      %v874 = vunpack.c.l.b16 %v834
      %v875 = vunpack.c.l.b16 %v835
      %v876 = vpack.c.b16 %v875, %v874
      %878 = vrot.lane.b32.xlu0 %v870, 127
      %v879 = vpop.permute.xlu0 %878
      %881 = vmatpush.bf16.msra.mxu0 %v876
      %882 = vmatpush.bf16.msra.mxu0 %v870
      %883 = vmatpush.bf16.msra.mxu0 %v864
      %884 = vmatpush.bf16.msra.mxu0 %v861
      %885 = vmatpush.bf16.msra.mxu0 %v855
      %886 = vmatpush.bf16.msra.mxu0 %v849
      %887 = vmatpush.bf16.msra.mxu0 %v846
      %888 = vmatpush.bf16.msra.mxu0 %v840
      %889 = vmatmul.bf16.gmra.mxu0 %v738
      %v890 = vpop.f32.mrf.mxu0
      %v891 = vadd.f32 %v725, %v890
      %v892 = vpop.f32.mrf.mxu0
      %v893 = vadd.f32 %v730, %v892
      %894 = vdwg.mxu0
      %895 = vmatpush.bf16.msra.mxu0 0
      %896 = vmatpush.bf16.msra.mxu0 0
      %897 = vmatpush.bf16.msra.mxu0 0
      %898 = vmatpush.bf16.msra.mxu0 0
      %899 = vmatpush.bf16.msra.mxu0 0
      %900 = vmatpush.bf16.msra.mxu0 0
      %901 = vmatpush.bf16.msra.mxu0 0
      %902 = vmatpush.bf16.msra.mxu0 %v879
      %903 = vmatmul.bf16.gmra.mxu0 %v743
      %v904 = vpop.f32.mrf.mxu0
      %v905 = vadd.f32 %v891, %v904
      %v906 = vpop.f32.mrf.mxu0
      %v907 = vadd.f32 %v893, %v906
      %908 = vdwg.mxu0
      %v911 = vrot.slane %v905, 1
      %v912 = vrot.slane %v905, 2
      %v913 = vrot.slane %v905, 3
      %v914 = vrot.slane %v905, 4
      %v915 = vrot.slane %v905, 5
      %v916 = vrot.slane %v905, 6
      %v917 = vrot.slane %v905, 7
      %v918 = vrot.slane %v907, 1
      %v919 = vrot.slane %v907, 2
      %v920 = vrot.slane %v907, 3
      %v921 = vrot.slane %v907, 4
      %v922 = vrot.slane %v907, 5
      %v923 = vrot.slane %v907, 6
      %v924 = vrot.slane %v907, 7
      %939 = vst.msk [vmem:[%s657 + $0x1] sm:$0x1] %vm803, %v905
      %940 = vst.msk [vmem:[%s657 + $0x9] sm:$0x1] %vm803, %v911
      %941 = vst.msk [vmem:[%s657 + $0x11] sm:$0x1] %vm803, %v912
      %942 = vst.msk [vmem:[%s657 + $0x19] sm:$0x1] %vm803, %v913
      %943 = vst.msk [vmem:[%s657 + $0x21] sm:$0x1] %vm803, %v914
      %944 = vst.msk [vmem:[%s657 + $0x29] sm:$0x1] %vm803, %v915
      %945 = vst.msk [vmem:[%s657 + $0x31] sm:$0x1] %vm803, %v916
      %946 = vst.msk [vmem:[%s657 + $0x39] sm:$0x1] %vm803, %v917
      %947 = vst.msk [vmem:[%s657 + $0x41] sm:$0x1] %vm803, %v907
      %948 = vst.msk [vmem:[%s657 + $0x49] sm:$0x1] %vm803, %v918
      %949 = vst.msk [vmem:[%s657 + $0x51] sm:$0x1] %vm803, %v919
      %950 = vst.msk [vmem:[%s657 + $0x59] sm:$0x1] %vm803, %v920
      %951 = vst.msk [vmem:[%s657 + $0x61] sm:$0x1] %vm803, %v921
      %952 = vst.msk [vmem:[%s657 + $0x69] sm:$0x1] %vm803, %v922
      %953 = vst.msk [vmem:[%s657 + $0x71] sm:$0x1] %vm803, %v923
      %954 = vst.msk [vmem:[%s657 + $0x79] sm:$0x1] %vm803, %v924
      %v955 = vld [vmem:[%s830] sm:$0xf]
      %v956 = vld [vmem:[%s830 + $0x4] sm:$0xf]
      %v957 = vld [vmem:[%s833] sm:$0xf]
      %v958 = vld [vmem:[%s833 + $0x4] sm:$0xf]
      %s959 = scalar_lea.vmem %s622, 16
      %v960 = vld [vmem:[%s959] sm:$0xf]
      %v961 = vld [vmem:[%s959 + $0x4] sm:$0xf]
      %s962 = scalar_lea.vmem %s643, 16
      %v963 = vld [vmem:[%s962] sm:$0xf]
      %v964 = vld [vmem:[%s962 + $0x4] sm:$0xf]
      %s965 = scalar_lea.vmem %s554, 24
      %v966 = vld [vmem:[%s965] sm:$0xf]
      %v967 = vld [vmem:[%s965 + $0x4] sm:$0xf]
      %s968 = scalar_lea.vmem %s588, 24
      %v969 = vld [vmem:[%s968] sm:$0xf]
      %v970 = vld [vmem:[%s968 + $0x4] sm:$0xf]
      %v973 = vunpack.c.l.b16 %v955
      %v974 = vunpack.c.l.b16 %v956
      %v975 = vpack.c.b16 %v974, %v973
      %v979 = vunpack.c.l.b16 %v957
      %v980 = vunpack.c.l.b16 %v958
      %v981 = vpack.c.b16 %v980, %v979
      %983 = vrot.lane.b32.xlu0 %v975, 127
      %v984 = vpop.permute.xlu0 %983
      %v988 = vunpack.c.l.b16 %v960
      %v989 = vunpack.c.l.b16 %v961
      %v990 = vpack.c.b16 %v989, %v988
      %v994 = vunpack.c.l.b16 %v963
      %v995 = vunpack.c.l.b16 %v964
      %v996 = vpack.c.b16 %v995, %v994
      %998 = vrot.lane.b32.xlu0 %v990, 127
      %v999 = vpop.permute.xlu0 %998
      %v1003 = vunpack.c.l.b16 %v966
      %v1004 = vunpack.c.l.b16 %v967
      %v1005 = vpack.c.b16 %v1004, %v1003
      %v1009 = vunpack.c.l.b16 %v969
      %v1010 = vunpack.c.l.b16 %v970
      %v1011 = vpack.c.b16 %v1010, %v1009
      %1013 = vrot.lane.b32.xlu0 %v1005, 127
      %v1014 = vpop.permute.xlu0 %1013
      %1016 = vmatpush.bf16.msra.mxu0 %v1011
      %1017 = vmatpush.bf16.msra.mxu0 %v1005
      %1018 = vmatpush.bf16.msra.mxu0 %v999
      %1019 = vmatpush.bf16.msra.mxu0 %v996
      %1020 = vmatpush.bf16.msra.mxu0 %v990
      %1021 = vmatpush.bf16.msra.mxu0 %v984
      %1022 = vmatpush.bf16.msra.mxu0 %v981
      %1023 = vmatpush.bf16.msra.mxu0 %v975
      %1024 = vmatmul.bf16.gmra.mxu0 %v738
      %v1025 = vpop.f32.mrf.mxu0
      %v1026 = vadd.f32 %v725, %v1025
      %v1027 = vpop.f32.mrf.mxu0
      %v1028 = vadd.f32 %v730, %v1027
      %1029 = vdwg.mxu0
      %1030 = vmatpush.bf16.msra.mxu0 0
      %1031 = vmatpush.bf16.msra.mxu0 0
      %1032 = vmatpush.bf16.msra.mxu0 0
      %1033 = vmatpush.bf16.msra.mxu0 0
      %1034 = vmatpush.bf16.msra.mxu0 0
      %1035 = vmatpush.bf16.msra.mxu0 0
      %1036 = vmatpush.bf16.msra.mxu0 0
      %1037 = vmatpush.bf16.msra.mxu0 %v1014
      %1038 = vmatmul.bf16.gmra.mxu0 %v743
      %v1039 = vpop.f32.mrf.mxu0
      %v1040 = vadd.f32 %v1026, %v1039
      %v1041 = vpop.f32.mrf.mxu0
      %v1042 = vadd.f32 %v1028, %v1041
      %1043 = vdwg.mxu0
      %v1046 = vrot.slane %v1040, 1
      %v1047 = vrot.slane %v1040, 2
      %v1048 = vrot.slane %v1040, 3
      %v1049 = vrot.slane %v1040, 4
      %v1050 = vrot.slane %v1040, 5
      %v1051 = vrot.slane %v1040, 6
      %v1052 = vrot.slane %v1040, 7
      %v1053 = vrot.slane %v1042, 1
      %v1054 = vrot.slane %v1042, 2
      %v1055 = vrot.slane %v1042, 3
      %v1056 = vrot.slane %v1042, 4
      %v1057 = vrot.slane %v1042, 5
      %v1058 = vrot.slane %v1042, 6
      %v1059 = vrot.slane %v1042, 7
      %1074 = vst.msk [vmem:[%s657 + $0x2] sm:$0x1] %vm803, %v1040
      %1075 = vst.msk [vmem:[%s657 + $0xa] sm:$0x1] %vm803, %v1046
      %1076 = vst.msk [vmem:[%s657 + $0x12] sm:$0x1] %vm803, %v1047
      %1077 = vst.msk [vmem:[%s657 + $0x1a] sm:$0x1] %vm803, %v1048
      %1078 = vst.msk [vmem:[%s657 + $0x22] sm:$0x1] %vm803, %v1049
      %1079 = vst.msk [vmem:[%s657 + $0x2a] sm:$0x1] %vm803, %v1050
      %1080 = vst.msk [vmem:[%s657 + $0x32] sm:$0x1] %vm803, %v1051
      %1081 = vst.msk [vmem:[%s657 + $0x3a] sm:$0x1] %vm803, %v1052
      %1082 = vst.msk [vmem:[%s657 + $0x42] sm:$0x1] %vm803, %v1042
      %1083 = vst.msk [vmem:[%s657 + $0x4a] sm:$0x1] %vm803, %v1053
      %1084 = vst.msk [vmem:[%s657 + $0x52] sm:$0x1] %vm803, %v1054
      %1085 = vst.msk [vmem:[%s657 + $0x5a] sm:$0x1] %vm803, %v1055
      %1086 = vst.msk [vmem:[%s657 + $0x62] sm:$0x1] %vm803, %v1056
      %1087 = vst.msk [vmem:[%s657 + $0x6a] sm:$0x1] %vm803, %v1057
      %1088 = vst.msk [vmem:[%s657 + $0x72] sm:$0x1] %vm803, %v1058
      %1089 = vst.msk [vmem:[%s657 + $0x7a] sm:$0x1] %vm803, %v1059
      %v1090 = vld [vmem:[%s965] sm:$0xf]
      %v1091 = vld [vmem:[%s965 + $0x4] sm:$0xf]
      %v1092 = vld [vmem:[%s968] sm:$0xf]
      %v1093 = vld [vmem:[%s968 + $0x4] sm:$0xf]
      %s1094 = scalar_lea.vmem %s622, 24
      %v1095 = vld [vmem:[%s1094] sm:$0xf]
      %v1096 = vld [vmem:[%s1094 + $0x4] sm:$0xf]
      %s1097 = scalar_lea.vmem %s643, 24
      %v1098 = vld [vmem:[%s1097] sm:$0xf]
      %v1099 = vld [vmem:[%s1097 + $0x4] sm:$0xf]
      %s1100 = scalar_lea.vmem %s554, 32
      %v1101 = vld [vmem:[%s1100] sm:$0xf]
      %v1102 = vld [vmem:[%s1100 + $0x4] sm:$0xf]
      %s1103 = scalar_lea.vmem %s588, 32
      %v1104 = vld [vmem:[%s1103] sm:$0xf]
      %v1105 = vld [vmem:[%s1103 + $0x4] sm:$0xf]
      %v1108 = vunpack.c.l.b16 %v1090
      %v1109 = vunpack.c.l.b16 %v1091
      %v1110 = vpack.c.b16 %v1109, %v1108
      %v1114 = vunpack.c.l.b16 %v1092
      %v1115 = vunpack.c.l.b16 %v1093
      %v1116 = vpack.c.b16 %v1115, %v1114
      %1118 = vrot.lane.b32.xlu0 %v1110, 127
      %v1119 = vpop.permute.xlu0 %1118
      %v1123 = vunpack.c.l.b16 %v1095
      %v1124 = vunpack.c.l.b16 %v1096
      %v1125 = vpack.c.b16 %v1124, %v1123
      %v1129 = vunpack.c.l.b16 %v1098
      %v1130 = vunpack.c.l.b16 %v1099
      %v1131 = vpack.c.b16 %v1130, %v1129
      %1133 = vrot.lane.b32.xlu0 %v1125, 127
      %v1134 = vpop.permute.xlu0 %1133
      %v1138 = vunpack.c.l.b16 %v1101
      %v1139 = vunpack.c.l.b16 %v1102
      %v1140 = vpack.c.b16 %v1139, %v1138
      %v1144 = vunpack.c.l.b16 %v1104
      %v1145 = vunpack.c.l.b16 %v1105
      %v1146 = vpack.c.b16 %v1145, %v1144
      %1148 = vrot.lane.b32.xlu0 %v1140, 127
      %v1149 = vpop.permute.xlu0 %1148
      %1151 = vmatpush.bf16.msra.mxu0 %v1146
      %1152 = vmatpush.bf16.msra.mxu0 %v1140
      %1153 = vmatpush.bf16.msra.mxu0 %v1134
      %1154 = vmatpush.bf16.msra.mxu0 %v1131
      %1155 = vmatpush.bf16.msra.mxu0 %v1125
      %1156 = vmatpush.bf16.msra.mxu0 %v1119
      %1157 = vmatpush.bf16.msra.mxu0 %v1116
      %1158 = vmatpush.bf16.msra.mxu0 %v1110
      %1159 = vmatmul.bf16.gmra.mxu0 %v738
      %v1160 = vpop.f32.mrf.mxu0
      %v1161 = vadd.f32 %v725, %v1160
      %v1162 = vpop.f32.mrf.mxu0
      %v1163 = vadd.f32 %v730, %v1162
      %1164 = vdwg.mxu0
      %1165 = vmatpush.bf16.msra.mxu0 0
      %1166 = vmatpush.bf16.msra.mxu0 0
      %1167 = vmatpush.bf16.msra.mxu0 0
      %1168 = vmatpush.bf16.msra.mxu0 0
      %1169 = vmatpush.bf16.msra.mxu0 0
      %1170 = vmatpush.bf16.msra.mxu0 0
      %1171 = vmatpush.bf16.msra.mxu0 0
      %1172 = vmatpush.bf16.msra.mxu0 %v1149
      %1173 = vmatmul.bf16.gmra.mxu0 %v743
      %v1174 = vpop.f32.mrf.mxu0
      %v1175 = vadd.f32 %v1161, %v1174
      %v1176 = vpop.f32.mrf.mxu0
      %v1177 = vadd.f32 %v1163, %v1176
      %1178 = vdwg.mxu0
      %v1181 = vrot.slane %v1175, 1
      %v1182 = vrot.slane %v1175, 2
      %v1183 = vrot.slane %v1175, 3
      %v1184 = vrot.slane %v1175, 4
      %v1185 = vrot.slane %v1175, 5
      %v1186 = vrot.slane %v1175, 6
      %v1187 = vrot.slane %v1175, 7
      %v1188 = vrot.slane %v1177, 1
      %v1189 = vrot.slane %v1177, 2
      %v1190 = vrot.slane %v1177, 3
      %v1191 = vrot.slane %v1177, 4
      %v1192 = vrot.slane %v1177, 5
      %v1193 = vrot.slane %v1177, 6
      %v1194 = vrot.slane %v1177, 7
      %1209 = vst.msk [vmem:[%s657 + $0x3] sm:$0x1] %vm803, %v1175
      %1210 = vst.msk [vmem:[%s657 + $0xb] sm:$0x1] %vm803, %v1181
      %1211 = vst.msk [vmem:[%s657 + $0x13] sm:$0x1] %vm803, %v1182
      %1212 = vst.msk [vmem:[%s657 + $0x1b] sm:$0x1] %vm803, %v1183
      %1213 = vst.msk [vmem:[%s657 + $0x23] sm:$0x1] %vm803, %v1184
      %1214 = vst.msk [vmem:[%s657 + $0x2b] sm:$0x1] %vm803, %v1185
      %1215 = vst.msk [vmem:[%s657 + $0x33] sm:$0x1] %vm803, %v1186
      %1216 = vst.msk [vmem:[%s657 + $0x3b] sm:$0x1] %vm803, %v1187
      %1217 = vst.msk [vmem:[%s657 + $0x43] sm:$0x1] %vm803, %v1177
      %1218 = vst.msk [vmem:[%s657 + $0x4b] sm:$0x1] %vm803, %v1188
      %1219 = vst.msk [vmem:[%s657 + $0x53] sm:$0x1] %vm803, %v1189
      %1220 = vst.msk [vmem:[%s657 + $0x5b] sm:$0x1] %vm803, %v1190
      %1221 = vst.msk [vmem:[%s657 + $0x63] sm:$0x1] %vm803, %v1191
      %1222 = vst.msk [vmem:[%s657 + $0x6b] sm:$0x1] %vm803, %v1192
      %1223 = vst.msk [vmem:[%s657 + $0x73] sm:$0x1] %vm803, %v1193
      %1224 = vst.msk [vmem:[%s657 + $0x7b] sm:$0x1] %vm803, %v1194
      %v1225 = vld [vmem:[%s1100] sm:$0xf]
      %v1226 = vld [vmem:[%s1100 + $0x4] sm:$0xf]
      %v1227 = vld [vmem:[%s1103] sm:$0xf]
      %v1228 = vld [vmem:[%s1103 + $0x4] sm:$0xf]
      %s1229 = scalar_lea.vmem %s622, 32
      %v1230 = vld [vmem:[%s1229] sm:$0xf]
      %v1231 = vld [vmem:[%s1229 + $0x4] sm:$0xf]
      %s1232 = scalar_lea.vmem %s643, 32
      %v1233 = vld [vmem:[%s1232] sm:$0xf]
      %v1234 = vld [vmem:[%s1232 + $0x4] sm:$0xf]
      %s1235 = scalar_lea.vmem %s554, 40
      %v1236 = vld [vmem:[%s1235] sm:$0xf]
      %v1237 = vld [vmem:[%s1235 + $0x4] sm:$0xf]
      %s1238 = scalar_lea.vmem %s588, 40
      %v1239 = vld [vmem:[%s1238] sm:$0xf]
      %v1240 = vld [vmem:[%s1238 + $0x4] sm:$0xf]
      %v1243 = vunpack.c.l.b16 %v1225
      %v1244 = vunpack.c.l.b16 %v1226
      %v1245 = vpack.c.b16 %v1244, %v1243
      %v1249 = vunpack.c.l.b16 %v1227
      %v1250 = vunpack.c.l.b16 %v1228
      %v1251 = vpack.c.b16 %v1250, %v1249
      %1253 = vrot.lane.b32.xlu0 %v1245, 127
      %v1254 = vpop.permute.xlu0 %1253
      %v1258 = vunpack.c.l.b16 %v1230
      %v1259 = vunpack.c.l.b16 %v1231
      %v1260 = vpack.c.b16 %v1259, %v1258
      %v1264 = vunpack.c.l.b16 %v1233
      %v1265 = vunpack.c.l.b16 %v1234
      %v1266 = vpack.c.b16 %v1265, %v1264
      %1268 = vrot.lane.b32.xlu0 %v1260, 127
      %v1269 = vpop.permute.xlu0 %1268
      %v1273 = vunpack.c.l.b16 %v1236
      %v1274 = vunpack.c.l.b16 %v1237
      %v1275 = vpack.c.b16 %v1274, %v1273
      %v1279 = vunpack.c.l.b16 %v1239
      %v1280 = vunpack.c.l.b16 %v1240
      %v1281 = vpack.c.b16 %v1280, %v1279
      %1283 = vrot.lane.b32.xlu0 %v1275, 127
      %v1284 = vpop.permute.xlu0 %1283
      %1286 = vmatpush.bf16.msra.mxu0 %v1281
      %1287 = vmatpush.bf16.msra.mxu0 %v1275
      %1288 = vmatpush.bf16.msra.mxu0 %v1269
      %1289 = vmatpush.bf16.msra.mxu0 %v1266
      %1290 = vmatpush.bf16.msra.mxu0 %v1260
      %1291 = vmatpush.bf16.msra.mxu0 %v1254
      %1292 = vmatpush.bf16.msra.mxu0 %v1251
      %1293 = vmatpush.bf16.msra.mxu0 %v1245
      %1294 = vmatmul.bf16.gmra.mxu0 %v738
      %v1295 = vpop.f32.mrf.mxu0
      %v1296 = vadd.f32 %v725, %v1295
      %v1297 = vpop.f32.mrf.mxu0
      %v1298 = vadd.f32 %v730, %v1297
      %1299 = vdwg.mxu0
      %1300 = vmatpush.bf16.msra.mxu0 0
      %1301 = vmatpush.bf16.msra.mxu0 0
      %1302 = vmatpush.bf16.msra.mxu0 0
      %1303 = vmatpush.bf16.msra.mxu0 0
      %1304 = vmatpush.bf16.msra.mxu0 0
      %1305 = vmatpush.bf16.msra.mxu0 0
      %1306 = vmatpush.bf16.msra.mxu0 0
      %1307 = vmatpush.bf16.msra.mxu0 %v1284
      %1308 = vmatmul.bf16.gmra.mxu0 %v743
      %v1309 = vpop.f32.mrf.mxu0
      %v1310 = vadd.f32 %v1296, %v1309
      %v1311 = vpop.f32.mrf.mxu0
      %v1312 = vadd.f32 %v1298, %v1311
      %1313 = vdwg.mxu0
      %v1316 = vrot.slane %v1310, 1
      %v1317 = vrot.slane %v1310, 2
      %v1318 = vrot.slane %v1310, 3
      %v1319 = vrot.slane %v1310, 4
      %v1320 = vrot.slane %v1310, 5
      %v1321 = vrot.slane %v1310, 6
      %v1322 = vrot.slane %v1310, 7
      %v1323 = vrot.slane %v1312, 1
      %v1324 = vrot.slane %v1312, 2
      %v1325 = vrot.slane %v1312, 3
      %v1326 = vrot.slane %v1312, 4
      %v1327 = vrot.slane %v1312, 5
      %v1328 = vrot.slane %v1312, 6
      %v1329 = vrot.slane %v1312, 7
      %1344 = vst.msk [vmem:[%s657 + $0x4] sm:$0x1] %vm803, %v1310
      %1345 = vst.msk [vmem:[%s657 + $0xc] sm:$0x1] %vm803, %v1316
      %1346 = vst.msk [vmem:[%s657 + $0x14] sm:$0x1] %vm803, %v1317
      %1347 = vst.msk [vmem:[%s657 + $0x1c] sm:$0x1] %vm803, %v1318
      %1348 = vst.msk [vmem:[%s657 + $0x24] sm:$0x1] %vm803, %v1319
      %1349 = vst.msk [vmem:[%s657 + $0x2c] sm:$0x1] %vm803, %v1320
      %1350 = vst.msk [vmem:[%s657 + $0x34] sm:$0x1] %vm803, %v1321
      %1351 = vst.msk [vmem:[%s657 + $0x3c] sm:$0x1] %vm803, %v1322
      %1352 = vst.msk [vmem:[%s657 + $0x44] sm:$0x1] %vm803, %v1312
      %1353 = vst.msk [vmem:[%s657 + $0x4c] sm:$0x1] %vm803, %v1323
      %1354 = vst.msk [vmem:[%s657 + $0x54] sm:$0x1] %vm803, %v1324
      %1355 = vst.msk [vmem:[%s657 + $0x5c] sm:$0x1] %vm803, %v1325
      %1356 = vst.msk [vmem:[%s657 + $0x64] sm:$0x1] %vm803, %v1326
      %1357 = vst.msk [vmem:[%s657 + $0x6c] sm:$0x1] %vm803, %v1327
      %1358 = vst.msk [vmem:[%s657 + $0x74] sm:$0x1] %vm803, %v1328
      %1359 = vst.msk [vmem:[%s657 + $0x7c] sm:$0x1] %vm803, %v1329
      %v1360 = vld [vmem:[%s1235] sm:$0xf]
      %v1361 = vld [vmem:[%s1235 + $0x4] sm:$0xf]
      %v1362 = vld [vmem:[%s1238] sm:$0xf]
      %v1363 = vld [vmem:[%s1238 + $0x4] sm:$0xf]
      %s1364 = scalar_lea.vmem %s622, 40
      %v1365 = vld [vmem:[%s1364] sm:$0xf]
      %v1366 = vld [vmem:[%s1364 + $0x4] sm:$0xf]
      %s1367 = scalar_lea.vmem %s643, 40
      %v1368 = vld [vmem:[%s1367] sm:$0xf]
      %v1369 = vld [vmem:[%s1367 + $0x4] sm:$0xf]
      %s1370 = scalar_lea.vmem %s554, 48
      %v1371 = vld [vmem:[%s1370] sm:$0xf]
      %v1372 = vld [vmem:[%s1370 + $0x4] sm:$0xf]
      %s1373 = scalar_lea.vmem %s588, 48
      %v1374 = vld [vmem:[%s1373] sm:$0xf]
      %v1375 = vld [vmem:[%s1373 + $0x4] sm:$0xf]
      %v1378 = vunpack.c.l.b16 %v1360
      %v1379 = vunpack.c.l.b16 %v1361
      %v1380 = vpack.c.b16 %v1379, %v1378
      %v1384 = vunpack.c.l.b16 %v1362
      %v1385 = vunpack.c.l.b16 %v1363
      %v1386 = vpack.c.b16 %v1385, %v1384
      %1388 = vrot.lane.b32.xlu0 %v1380, 127
      %v1389 = vpop.permute.xlu0 %1388
      %v1393 = vunpack.c.l.b16 %v1365
      %v1394 = vunpack.c.l.b16 %v1366
      %v1395 = vpack.c.b16 %v1394, %v1393
      %v1399 = vunpack.c.l.b16 %v1368
      %v1400 = vunpack.c.l.b16 %v1369
      %v1401 = vpack.c.b16 %v1400, %v1399
      %1403 = vrot.lane.b32.xlu0 %v1395, 127
      %v1404 = vpop.permute.xlu0 %1403
      %v1408 = vunpack.c.l.b16 %v1371
      %v1409 = vunpack.c.l.b16 %v1372
      %v1410 = vpack.c.b16 %v1409, %v1408
      %v1414 = vunpack.c.l.b16 %v1374
      %v1415 = vunpack.c.l.b16 %v1375
      %v1416 = vpack.c.b16 %v1415, %v1414
      %1418 = vrot.lane.b32.xlu0 %v1410, 127
      %v1419 = vpop.permute.xlu0 %1418
      %1421 = vmatpush.bf16.msra.mxu0 %v1416
      %1422 = vmatpush.bf16.msra.mxu0 %v1410
      %1423 = vmatpush.bf16.msra.mxu0 %v1404
      %1424 = vmatpush.bf16.msra.mxu0 %v1401
      %1425 = vmatpush.bf16.msra.mxu0 %v1395
      %1426 = vmatpush.bf16.msra.mxu0 %v1389
      %1427 = vmatpush.bf16.msra.mxu0 %v1386
      %1428 = vmatpush.bf16.msra.mxu0 %v1380
      %1429 = vmatmul.bf16.gmra.mxu0 %v738
      %v1430 = vpop.f32.mrf.mxu0
      %v1431 = vadd.f32 %v725, %v1430
      %v1432 = vpop.f32.mrf.mxu0
      %v1433 = vadd.f32 %v730, %v1432
      %1434 = vdwg.mxu0
      %1435 = vmatpush.bf16.msra.mxu0 0
      %1436 = vmatpush.bf16.msra.mxu0 0
      %1437 = vmatpush.bf16.msra.mxu0 0
      %1438 = vmatpush.bf16.msra.mxu0 0
      %1439 = vmatpush.bf16.msra.mxu0 0
      %1440 = vmatpush.bf16.msra.mxu0 0
      %1441 = vmatpush.bf16.msra.mxu0 0
      %1442 = vmatpush.bf16.msra.mxu0 %v1419
      %1443 = vmatmul.bf16.gmra.mxu0 %v743
      %v1444 = vpop.f32.mrf.mxu0
      %v1445 = vadd.f32 %v1431, %v1444
      %v1446 = vpop.f32.mrf.mxu0
      %v1447 = vadd.f32 %v1433, %v1446
      %1448 = vdwg.mxu0
      %v1451 = vrot.slane %v1445, 1
      %v1452 = vrot.slane %v1445, 2
      %v1453 = vrot.slane %v1445, 3
      %v1454 = vrot.slane %v1445, 4
      %v1455 = vrot.slane %v1445, 5
      %v1456 = vrot.slane %v1445, 6
      %v1457 = vrot.slane %v1445, 7
      %v1458 = vrot.slane %v1447, 1
      %v1459 = vrot.slane %v1447, 2
      %v1460 = vrot.slane %v1447, 3
      %v1461 = vrot.slane %v1447, 4
      %v1462 = vrot.slane %v1447, 5
      %v1463 = vrot.slane %v1447, 6
      %v1464 = vrot.slane %v1447, 7
      %1479 = vst.msk [vmem:[%s657 + $0x5] sm:$0x1] %vm803, %v1445
      %1480 = vst.msk [vmem:[%s657 + $0xd] sm:$0x1] %vm803, %v1451
      %1481 = vst.msk [vmem:[%s657 + $0x15] sm:$0x1] %vm803, %v1452
      %1482 = vst.msk [vmem:[%s657 + $0x1d] sm:$0x1] %vm803, %v1453
      %1483 = vst.msk [vmem:[%s657 + $0x25] sm:$0x1] %vm803, %v1454
      %1484 = vst.msk [vmem:[%s657 + $0x2d] sm:$0x1] %vm803, %v1455
      %1485 = vst.msk [vmem:[%s657 + $0x35] sm:$0x1] %vm803, %v1456
      %1486 = vst.msk [vmem:[%s657 + $0x3d] sm:$0x1] %vm803, %v1457
      %1487 = vst.msk [vmem:[%s657 + $0x45] sm:$0x1] %vm803, %v1447
      %1488 = vst.msk [vmem:[%s657 + $0x4d] sm:$0x1] %vm803, %v1458
      %1489 = vst.msk [vmem:[%s657 + $0x55] sm:$0x1] %vm803, %v1459
      %1490 = vst.msk [vmem:[%s657 + $0x5d] sm:$0x1] %vm803, %v1460
      %1491 = vst.msk [vmem:[%s657 + $0x65] sm:$0x1] %vm803, %v1461
      %1492 = vst.msk [vmem:[%s657 + $0x6d] sm:$0x1] %vm803, %v1462
      %1493 = vst.msk [vmem:[%s657 + $0x75] sm:$0x1] %vm803, %v1463
      %1494 = vst.msk [vmem:[%s657 + $0x7d] sm:$0x1] %vm803, %v1464
      %v1495 = vld [vmem:[%s1370] sm:$0xf]
      %v1496 = vld [vmem:[%s1370 + $0x4] sm:$0xf]
      %v1497 = vld [vmem:[%s1373] sm:$0xf]
      %v1498 = vld [vmem:[%s1373 + $0x4] sm:$0xf]
      %s1499 = scalar_lea.vmem %s622, 48
      %v1500 = vld [vmem:[%s1499] sm:$0xf]
      %v1501 = vld [vmem:[%s1499 + $0x4] sm:$0xf]
      %s1502 = scalar_lea.vmem %s643, 48
      %v1503 = vld [vmem:[%s1502] sm:$0xf]
      %v1504 = vld [vmem:[%s1502 + $0x4] sm:$0xf]
      %s1505 = scalar_lea.vmem %s554, 56
      %v1506 = vld [vmem:[%s1505] sm:$0xf]
      %v1507 = vld [vmem:[%s1505 + $0x4] sm:$0xf]
      %s1508 = scalar_lea.vmem %s588, 56
      %v1509 = vld [vmem:[%s1508] sm:$0xf]
      %v1510 = vld [vmem:[%s1508 + $0x4] sm:$0xf]
      %v1513 = vunpack.c.l.b16 %v1495
      %v1514 = vunpack.c.l.b16 %v1496
      %v1515 = vpack.c.b16 %v1514, %v1513
      %v1519 = vunpack.c.l.b16 %v1497
      %v1520 = vunpack.c.l.b16 %v1498
      %v1521 = vpack.c.b16 %v1520, %v1519
      %1523 = vrot.lane.b32.xlu0 %v1515, 127
      %v1524 = vpop.permute.xlu0 %1523
      %v1528 = vunpack.c.l.b16 %v1500
      %v1529 = vunpack.c.l.b16 %v1501
      %v1530 = vpack.c.b16 %v1529, %v1528
      %v1534 = vunpack.c.l.b16 %v1503
      %v1535 = vunpack.c.l.b16 %v1504
      %v1536 = vpack.c.b16 %v1535, %v1534
      %1538 = vrot.lane.b32.xlu0 %v1530, 127
      %v1539 = vpop.permute.xlu0 %1538
      %v1543 = vunpack.c.l.b16 %v1506
      %v1544 = vunpack.c.l.b16 %v1507
      %v1545 = vpack.c.b16 %v1544, %v1543
      %v1549 = vunpack.c.l.b16 %v1509
      %v1550 = vunpack.c.l.b16 %v1510
      %v1551 = vpack.c.b16 %v1550, %v1549
      %1553 = vrot.lane.b32.xlu0 %v1545, 127
      %v1554 = vpop.permute.xlu0 %1553
      %1556 = vmatpush.bf16.msra.mxu0 %v1551
      %1557 = vmatpush.bf16.msra.mxu0 %v1545
      %1558 = vmatpush.bf16.msra.mxu0 %v1539
      %1559 = vmatpush.bf16.msra.mxu0 %v1536
      %1560 = vmatpush.bf16.msra.mxu0 %v1530
      %1561 = vmatpush.bf16.msra.mxu0 %v1524
      %1562 = vmatpush.bf16.msra.mxu0 %v1521
      %1563 = vmatpush.bf16.msra.mxu0 %v1515
      %1564 = vmatmul.bf16.gmra.mxu0 %v738
      %v1565 = vpop.f32.mrf.mxu0
      %v1566 = vadd.f32 %v725, %v1565
      %v1567 = vpop.f32.mrf.mxu0
      %v1568 = vadd.f32 %v730, %v1567
      %1569 = vdwg.mxu0
      %1570 = vmatpush.bf16.msra.mxu0 0
      %1571 = vmatpush.bf16.msra.mxu0 0
      %1572 = vmatpush.bf16.msra.mxu0 0
      %1573 = vmatpush.bf16.msra.mxu0 0
      %1574 = vmatpush.bf16.msra.mxu0 0
      %1575 = vmatpush.bf16.msra.mxu0 0
      %1576 = vmatpush.bf16.msra.mxu0 0
      %1577 = vmatpush.bf16.msra.mxu0 %v1554
      %1578 = vmatmul.bf16.gmra.mxu0 %v743
      %v1579 = vpop.f32.mrf.mxu0
      %v1580 = vadd.f32 %v1566, %v1579
      %v1581 = vpop.f32.mrf.mxu0
      %v1582 = vadd.f32 %v1568, %v1581
      %1583 = vdwg.mxu0
      %v1586 = vrot.slane %v1580, 1
      %v1587 = vrot.slane %v1580, 2
      %v1588 = vrot.slane %v1580, 3
      %v1589 = vrot.slane %v1580, 4
      %v1590 = vrot.slane %v1580, 5
      %v1591 = vrot.slane %v1580, 6
      %v1592 = vrot.slane %v1580, 7
      %v1593 = vrot.slane %v1582, 1
      %v1594 = vrot.slane %v1582, 2
      %v1595 = vrot.slane %v1582, 3
      %v1596 = vrot.slane %v1582, 4
      %v1597 = vrot.slane %v1582, 5
      %v1598 = vrot.slane %v1582, 6
      %v1599 = vrot.slane %v1582, 7
      %1614 = vst.msk [vmem:[%s657 + $0x6] sm:$0x1] %vm803, %v1580
      %1615 = vst.msk [vmem:[%s657 + $0xe] sm:$0x1] %vm803, %v1586
      %1616 = vst.msk [vmem:[%s657 + $0x16] sm:$0x1] %vm803, %v1587
      %1617 = vst.msk [vmem:[%s657 + $0x1e] sm:$0x1] %vm803, %v1588
      %1618 = vst.msk [vmem:[%s657 + $0x26] sm:$0x1] %vm803, %v1589
      %1619 = vst.msk [vmem:[%s657 + $0x2e] sm:$0x1] %vm803, %v1590
      %1620 = vst.msk [vmem:[%s657 + $0x36] sm:$0x1] %vm803, %v1591
      %1621 = vst.msk [vmem:[%s657 + $0x3e] sm:$0x1] %vm803, %v1592
      %1622 = vst.msk [vmem:[%s657 + $0x46] sm:$0x1] %vm803, %v1582
      %1623 = vst.msk [vmem:[%s657 + $0x4e] sm:$0x1] %vm803, %v1593
      %1624 = vst.msk [vmem:[%s657 + $0x56] sm:$0x1] %vm803, %v1594
      %1625 = vst.msk [vmem:[%s657 + $0x5e] sm:$0x1] %vm803, %v1595
      %1626 = vst.msk [vmem:[%s657 + $0x66] sm:$0x1] %vm803, %v1596
      %1627 = vst.msk [vmem:[%s657 + $0x6e] sm:$0x1] %vm803, %v1597
      %1628 = vst.msk [vmem:[%s657 + $0x76] sm:$0x1] %vm803, %v1598
      %1629 = vst.msk [vmem:[%s657 + $0x7e] sm:$0x1] %vm803, %v1599
      %v1630 = vld [vmem:[%s1505] sm:$0xf]
      %v1631 = vld [vmem:[%s1505 + $0x4] sm:$0xf]
      %v1632 = vld [vmem:[%s1508] sm:$0xf]
      %v1633 = vld [vmem:[%s1508 + $0x4] sm:$0xf]
      %s1634 = scalar_lea.vmem %s622, 56
      %v1635 = vld [vmem:[%s1634] sm:$0xf]
      %v1636 = vld [vmem:[%s1634 + $0x4] sm:$0xf]
      %s1637 = scalar_lea.vmem %s643, 56
      %v1638 = vld [vmem:[%s1637] sm:$0xf]
      %v1639 = vld [vmem:[%s1637 + $0x4] sm:$0xf]
      %v1640 = vld [vmem:[%s571] sm:$0xf]
      %v1641 = vld [vmem:[%s571 + $0x4] sm:$0xf]
      %v1642 = vld [vmem:[%s605] sm:$0xf]
      %v1643 = vld [vmem:[%s605 + $0x4] sm:$0xf]
      %v1646 = vunpack.c.l.b16 %v1630
      %v1647 = vunpack.c.l.b16 %v1631
      %v1648 = vpack.c.b16 %v1647, %v1646
      %v1652 = vunpack.c.l.b16 %v1632
      %v1653 = vunpack.c.l.b16 %v1633
      %v1654 = vpack.c.b16 %v1653, %v1652
      %1656 = vrot.lane.b32.xlu0 %v1648, 127
      %v1657 = vpop.permute.xlu0 %1656
      %v1661 = vunpack.c.l.b16 %v1635
      %v1662 = vunpack.c.l.b16 %v1636
      %v1663 = vpack.c.b16 %v1662, %v1661
      %v1667 = vunpack.c.l.b16 %v1638
      %v1668 = vunpack.c.l.b16 %v1639
      %v1669 = vpack.c.b16 %v1668, %v1667
      %1671 = vrot.lane.b32.xlu0 %v1663, 127
      %v1672 = vpop.permute.xlu0 %1671
      %v1676 = vunpack.c.l.b16 %v1640
      %v1677 = vunpack.c.l.b16 %v1641
      %v1678 = vpack.c.b16 %v1677, %v1676
      %v1682 = vunpack.c.l.b16 %v1642
      %v1683 = vunpack.c.l.b16 %v1643
      %v1684 = vpack.c.b16 %v1683, %v1682
      %1686 = vrot.lane.b32.xlu0 %v1678, 127
      %v1687 = vpop.permute.xlu0 %1686
      %1689 = vmatpush.bf16.msra.mxu0 %v1684
      %1690 = vmatpush.bf16.msra.mxu0 %v1678
      %1691 = vmatpush.bf16.msra.mxu0 %v1672
      %1692 = vmatpush.bf16.msra.mxu0 %v1669
      %1693 = vmatpush.bf16.msra.mxu0 %v1663
      %1694 = vmatpush.bf16.msra.mxu0 %v1657
      %1695 = vmatpush.bf16.msra.mxu0 %v1654
      %1696 = vmatpush.bf16.msra.mxu0 %v1648
      %1697 = vmatmul.bf16.gmra.mxu0 %v738
      %v1698 = vpop.f32.mrf.mxu0
      %v1699 = vadd.f32 %v725, %v1698
      %v1700 = vpop.f32.mrf.mxu0
      %v1701 = vadd.f32 %v730, %v1700
      %1702 = vdwg.mxu0
      %1703 = vmatpush.bf16.msra.mxu0 0
      %1704 = vmatpush.bf16.msra.mxu0 0
      %1705 = vmatpush.bf16.msra.mxu0 0
      %1706 = vmatpush.bf16.msra.mxu0 0
      %1707 = vmatpush.bf16.msra.mxu0 0
      %1708 = vmatpush.bf16.msra.mxu0 0
      %1709 = vmatpush.bf16.msra.mxu0 0
      %1710 = vmatpush.bf16.msra.mxu0 %v1687
      %1711 = vmatmul.bf16.gmra.mxu0 %v743
      %v1712 = vpop.f32.mrf.mxu0
      %v1713 = vadd.f32 %v1699, %v1712
      %v1714 = vpop.f32.mrf.mxu0
      %v1715 = vadd.f32 %v1701, %v1714
      %1716 = vdwg.mxu0
      %v1719 = vrot.slane %v1713, 1
      %v1720 = vrot.slane %v1713, 2
      %v1721 = vrot.slane %v1713, 3
      %v1722 = vrot.slane %v1713, 4
      %v1723 = vrot.slane %v1713, 5
      %v1724 = vrot.slane %v1713, 6
      %v1725 = vrot.slane %v1713, 7
      %v1726 = vrot.slane %v1715, 1
      %v1727 = vrot.slane %v1715, 2
      %v1728 = vrot.slane %v1715, 3
      %v1729 = vrot.slane %v1715, 4
      %v1730 = vrot.slane %v1715, 5
      %v1731 = vrot.slane %v1715, 6
      %v1732 = vrot.slane %v1715, 7
      %1747 = vst.msk [vmem:[%s657 + $0x7] sm:$0x1] %vm803, %v1713
      %1748 = vst.msk [vmem:[%s657 + $0xf] sm:$0x1] %vm803, %v1719
      %1749 = vst.msk [vmem:[%s657 + $0x17] sm:$0x1] %vm803, %v1720
      %1750 = vst.msk [vmem:[%s657 + $0x1f] sm:$0x1] %vm803, %v1721
      %1751 = vst.msk [vmem:[%s657 + $0x27] sm:$0x1] %vm803, %v1722
      %1752 = vst.msk [vmem:[%s657 + $0x2f] sm:$0x1] %vm803, %v1723
      %1753 = vst.msk [vmem:[%s657 + $0x37] sm:$0x1] %vm803, %v1724
      %1754 = vst.msk [vmem:[%s657 + $0x3f] sm:$0x1] %vm803, %v1725
      %1755 = vst.msk [vmem:[%s657 + $0x47] sm:$0x1] %vm803, %v1715
      %1756 = vst.msk [vmem:[%s657 + $0x4f] sm:$0x1] %vm803, %v1726
      %1757 = vst.msk [vmem:[%s657 + $0x57] sm:$0x1] %vm803, %v1727
      %1758 = vst.msk [vmem:[%s657 + $0x5f] sm:$0x1] %vm803, %v1728
      %1759 = vst.msk [vmem:[%s657 + $0x67] sm:$0x1] %vm803, %v1729
      %1760 = vst.msk [vmem:[%s657 + $0x6f] sm:$0x1] %vm803, %v1730
      %1761 = vst.msk [vmem:[%s657 + $0x77] sm:$0x1] %vm803, %v1731
      %1762 = vst.msk [vmem:[%s657 + $0x7f] sm:$0x1] %vm803, %v1732
      %p1763 = scmp.lt.s32.totalorder %s23, 1
      %s1764 = scalar_select %p1763, %s23, 1
      %p1765 = scmp.lt.s32.totalorder %s24, 0
      %s1766 = scalar_select %p1765, %s24, 0
      %s1767 = smul.addr %s1764, 16
      %s1768 = sadd.s32 %s1766, %s1767
      %s1769 = smul.addr %s1768, 8
      %s1770 = scalar_lea.vmem %s8, %s1769
      // Predicated region
      $region53: #{downsample_pallas.1} parent=51 // pred_check
        %p1771 = pneg %p269
      $region54: #{downsample_pallas.1} parent=51 // pred_check_branch
        %1773 = sbr.rel (%p1771) target = $region56
      $region55: #{downsample_pallas.1} parent=51 // pred_region
        _
      $region56: #{downsample_pallas.1} parent=51 // pred_fallthru
        _
    $region52: #{downsample_pallas.1} parent=5 // pred_fallthru
      _
    %p1774 = scmp.le.s32.totalorder 2, %s14
    // Predicated region
    $region57: #{downsample_pallas.1} parent=5 // pred_check
      %p1775 = pneg %p1774
    $region58: #{downsample_pallas.1} parent=5 // pred_check_branch
      %1777 = sbr.rel (%p1775) target = $region60
    $region59: #{downsample_pallas.1} parent=5 // pred_region
      %s1778 = ssub.s32 %s14, 2
      // Predicated region
      $region61: #{downsample_pallas.1} parent=59 // pred_check
        %p1779 = pneg %p275
      $region62: #{downsample_pallas.1} parent=59 // pred_check_branch
        %1781 = sbr.rel (%p1779) target = $region64
      $region63: #{downsample_pallas.1} parent=59 // pred_region
        %p1782 = scmp.lt.s32.totalorder %s25, 1
        %s1783 = scalar_select %p1782, %s25, 1
        %p1784 = scmp.lt.s32.totalorder %s26, 0
        %s1785 = scalar_select %p1784, %s26, 0
        %s1786 = smul.addr %s1783, 16
        %s1787 = sadd.s32 %s1785, %s1786
        %s1788 = smul.addr %s1787, 8
        %s1789 = scalar_lea.vmem %s8, %s1788
      $region64: #{downsample_pallas.1} parent=59 // pred_fallthru
        _
    $region60: #{downsample_pallas.1} parent=5 // pred_fallthru
      _
  $region6: #{downsample_pallas.1} parent=0 // loop_footer
    %s18 = sadd.s32 1, %s14
  $region7: #{downsample_pallas.1} parent=0 // loop_footer_branch
    %13 = sbr.rel target = $region3
  $region8: #{downsample_pallas.1} parent=0 // loop_exit
    _

</llo_original>
